<compile_context>
chip_gen: v7x
topology: tpu7x:2x2x1
jax: 0.10.0
libtpu: 0.0.40
codegen_flags: <defaults>
</compile_context>

<pallas_src>
import jax
import jax.numpy as jnp
import numpy as np
from jax.experimental import pallas as pl
from jax.experimental.pallas import tpu as pltpu


def gcn_kernel(x_ref, xt_ref, abin_ref, deg_ref,
               w_bd_ref, b_row_ref, w_ref, b_col_ref, mask_ref, out_ref):
    """One grid step processes Gb groups of gpb lane-packed graphs each."""
    Gb, L, P = abin_ref.shape            # P = gpb * L  (multiple of 128)
    gpb = P // L

    # --- H for all Gb groups in a single MXU matmul --------------------------
    # (Gb*L, P) x block_diag_g(W^T) (P, P) -> lane-packed H, (Gb*L, P).
    # The (Gb, L, P)->(Gb*L, P) collapse is layout-free (L is a sublane multiple).
    x2 = x_ref[...].reshape(Gb * L, P)
    h2 = jnp.dot(x2, w_bd_ref[...], preferred_element_type=jnp.float32)
    h2 = h2 + b_row_ref[...]                                         # (Gb*L, P)

    # --- H^T for all Gb groups in a single (tiny) MXU matmul -----------------
    # W (out_d, in_d) x X^T packed (in_d, Gb*P) -> lane-packed H^T, (out_d, Gb*P).
    ht_all = jnp.dot(w_ref[...], xt_ref[0], preferred_element_type=jnp.float32)
    ht_all = ht_all + b_col_ref[...]                                  # (out_d, Gb*P)

    mask = mask_ref[...]                 # resident (P, P) block-diag selector

    # --- per-group S matmul + combine (static unrolled loop over Gb) ---------
    for i in range(Gb):
        ht_i = ht_all[:, i * P:(i + 1) * P]        # (out_d, gpb*L), lane-aligned slice
        rhs = mask * jnp.tile(ht_i, (gpb, 1))      # (P, P) = block_diag_g(H_g^T)
        s = jnp.dot(abin_ref[i], rhs,
                    preferred_element_type=jnp.float32)               # (L, P)
        h_i = h2[i * L:(i + 1) * L, :]             # residual, (L, P)
        # NOTE: zero-degree nodes give inf — faithful to the PyTorch forward.
        out_ref[i] = (s + h_i) / deg_ref[i]        # deg_ref[i]: (1, P), last-axis bcast


def gcn_forward(node_features, adj_matrix, weight, bias,
                *, graphs_per_pack=4, groups_per_block=8):
    """node_features: (G, L, in_d), adj_matrix: (G, L, L) -> (G, L, out_d).

    Each graph g is processed with the module's BS=1 semantics.
    """
    G, L, in_d = node_features.shape
    out_d = weight.shape[0]
    assert in_d == out_d == L, "reference forward requires in_d == out_d == n_nodes"
    assert adj_matrix.shape == (G, L, L)
    gpb = graphs_per_pack
    Gb = groups_per_block
    P = gpb * L
    assert L % 8 == 0, "nodes-per-graph must be a sublane multiple"
    assert P % 128 == 0, "graphs_per_pack * L must be lane-dense (multiple of 128)"
    assert G % gpb == 0
    ngroups = G // gpb
    assert ngroups % Gb == 0, "demo packs a fixed number of groups per grid step"
    nb = ngroups // Gb                   # grid length; keep it even for v7x (2 TCs)

    f32 = jnp.float32
    nf = node_features.astype(f32)
    adj = adj_matrix.astype(f32)

    # ---- wrapper-side layout plumbing (pure reshape / transpose) ------------
    # gpb graphs side by side along the 128-lane axis, Gb groups per grid step.
    x_p = (nf.reshape(ngroups, gpb, L, in_d)
             .transpose(0, 2, 1, 3).reshape(ngroups, L, P))
    abin_p = ((adj != 0.0).astype(f32)             # S uses BINARIZED adj (reference)
              .reshape(ngroups, gpb, L, L)
              .transpose(0, 2, 1, 3).reshape(ngroups, L, P))
    deg_p = adj.sum(axis=2).reshape(ngroups, 1, P)  # degree from RAW adj (reference)
    # X^T lane-packed, Gb groups side by side along lanes: (nb, in_d, Gb*P)
    xt_p = (nf.reshape(nb, Gb, gpb, L, in_d)
              .transpose(0, 4, 1, 2, 3).reshape(nb, in_d, Gb * P))

    # Resident operands (constant index_map -> DMA'd once, stay in VMEM).
    w_bd = jnp.kron(jnp.eye(gpb, dtype=f32), weight.T.astype(f32))   # (P, P)
    b_row = jnp.tile(bias.astype(f32).reshape(1, out_d), (1, gpb))   # (1, P)
    w_kn = weight.astype(f32)                                        # (out_d, in_d)
    b_col = bias.astype(f32).reshape(out_d, 1)                       # (out_d, 1)
    lane_blk = jnp.arange(P, dtype=jnp.int32) // L
    mask = (lane_blk[:, None] == lane_blk[None, :]).astype(f32)      # (P, P)

    # Advisory cost estimate (resident operands counted once, not nb times).
    flops = nb * (2 * (Gb * L) * P * P            # H matmul
                  + 2 * out_d * in_d * (Gb * P)   # H^T matmul
                  + Gb * 2 * L * P * P)           # per-group S matmuls
    bytes_accessed = 4 * (x_p.size + xt_p.size + abin_p.size + deg_p.size
                          + ngroups * L * P       # output
                          + w_bd.size + b_row.size + w_kn.size + b_col.size
                          + mask.size)

    out_p = pl.pallas_call(
        gcn_kernel,
        out_shape=jax.ShapeDtypeStruct((ngroups, L, P), f32),
        grid=(nb,),
        in_specs=[
            pl.BlockSpec((Gb, L, P), lambda i: (i, 0, 0)),           # x_p
            pl.BlockSpec((1, in_d, Gb * P), lambda i: (i, 0, 0)),    # xt_p
            pl.BlockSpec((Gb, L, P), lambda i: (i, 0, 0)),           # abin_p
            pl.BlockSpec((Gb, 1, P), lambda i: (i, 0, 0)),           # deg_p
            pl.BlockSpec((P, P), lambda i: (0, 0)),                  # w_bd   (resident)
            pl.BlockSpec((1, P), lambda i: (0, 0)),                  # b_row  (resident)
            pl.BlockSpec((out_d, in_d), lambda i: (0, 0)),           # W      (resident)
            pl.BlockSpec((out_d, 1), lambda i: (0, 0)),              # b_col  (resident)
            pl.BlockSpec((P, P), lambda i: (0, 0)),                  # mask   (resident)
        ],
        out_specs=pl.BlockSpec((Gb, L, P), lambda i: (i, 0, 0)),
        compiler_params=pltpu.CompilerParams(dimension_semantics=("parallel",)),
        cost_estimate=pl.CostEstimate(flops=flops, transcendentals=0,
                                      bytes_accessed=bytes_accessed),
    )(x_p, xt_p, abin_p, deg_p, w_bd, b_row, w_kn, b_col, mask)

    # Unpack lanes back to (G, L, out_d).
    return (out_p.reshape(ngroups, L, gpb, out_d)
            .transpose(0, 2, 1, 3).reshape(G, L, out_d))


if __name__ == "__main__":
    key = jax.random.PRNGKey(0)
    G = 64                    # independent graphs (each = one BS=1 forward call)
    L = 32                    # nodes per graph
    in_d = out_d = L          # reference forward requires in_d == out_d == n_nodes
    GPB = 4                   # graphs packed along the 128-lane axis  (P = 128)
    GB = 8                    # graph-groups per grid step -> nb = 64/(4*8) = 2 (even)

    k1, k2, k3, k4 = jax.random.split(key, 4)
    node_features = jax.random.normal(k1, (G, L, in_d), jnp.float32)

    # symmetric binary adjacency with self loops (so every degree >= 1)
    a = (jax.random.uniform(k2, (G, L, L)) > 0.7).astype(jnp.float32)
    adj_matrix = jnp.clip(a + jnp.swapaxes(a, 1, 2) + jnp.eye(L, dtype=jnp.float32)[None],
                          0.0, 1.0)

    # deterministic nn.Linear-style init
    bound = 1.0 / np.sqrt(in_d)
    weight = jax.random.uniform(k3, (out_d, in_d), jnp.float32, -bound, bound)
    bias = jax.random.uniform(k4, (out_d,), jnp.float32, -bound, bound)

    out = jax.block_until_ready(
        gcn_forward(node_features, adj_matrix, weight, bias,
                    graphs_per_pack=GPB, groups_per_block=GB))

    # pure-JAX reference of the PyTorch forward, applied per graph (BS = 1 each)
    h_ref = jnp.einsum("gnf,of->gno", node_features, weight,
                       precision="highest") + bias
    s_ref = jnp.einsum("gij,gkj->gik", (adj_matrix != 0).astype(jnp.float32), h_ref,
                       precision="highest")
    deg_ref = adj_matrix.sum(axis=2)
    ref = (s_ref + h_ref) / deg_ref[:, None, :]

    assert out.shape == (G, L, out_d)
    # exact divide restored in-kernel -> tighter tolerance than previous version
    assert np.allclose(np.asarray(out), np.asarray(ref), atol=1e-3, rtol=1e-3)
    print("KERNEL_OK")
</pallas_src>

<mosaic_0001>
module attributes {stable_mosaic.version = 11 : i64} {
  func.func @gcn_kernel(%arg0: i32, %arg1: memref<8x32x128xf32, #tpu.memory_space<vmem>>, %arg2: memref<1x32x1024xf32, #tpu.memory_space<vmem>>, %arg3: memref<8x32x128xf32, #tpu.memory_space<vmem>>, %arg4: memref<8x1x128xf32, #tpu.memory_space<vmem>>, %arg5: memref<128x128xf32, #tpu.memory_space<vmem>>, %arg6: memref<1x128xf32, #tpu.memory_space<vmem>>, %arg7: memref<32x32xf32, #tpu.memory_space<vmem>>, %arg8: memref<32x1xf32, #tpu.memory_space<vmem>>, %arg9: memref<128x128xf32, #tpu.memory_space<vmem>>, %arg10: memref<8x32x128xf32, #tpu.memory_space<vmem>>) attributes {dimension_semantics = [#tpu.dimension_semantics<parallel>], iteration_bounds = array<i64: 2>, scalar_prefetch = 0 : i64, scratch_operands = 0 : i64, tpu.core_type = #tpu.core_type<tc>, window_params = [{transform_indices = @transform_0, window_bounds = array<i64: 8, 32, 128>}, {transform_indices = @transform_1, window_bounds = array<i64: 1, 32, 1024>}, {transform_indices = @transform_2, window_bounds = array<i64: 8, 32, 128>}, {transform_indices = @transform_3, window_bounds = array<i64: 8, 1, 128>}, {pipeline_mode = #tpu.pipeline_mode<synchronous>, transform_indices = @transform_4, window_bounds = array<i64: 128, 128>}, {pipeline_mode = #tpu.pipeline_mode<synchronous>, transform_indices = @transform_5, window_bounds = array<i64: 1, 128>}, {pipeline_mode = #tpu.pipeline_mode<synchronous>, transform_indices = @transform_6, window_bounds = array<i64: 32, 32>}, {pipeline_mode = #tpu.pipeline_mode<synchronous>, transform_indices = @transform_7, window_bounds = array<i64: 32, 1>}, {pipeline_mode = #tpu.pipeline_mode<synchronous>, transform_indices = @transform_8, window_bounds = array<i64: 128, 128>}, {transform_indices = @transform_9, window_bounds = array<i64: 8, 32, 128>}]} {
    %c0 = arith.constant 0 : index
    %c0_0 = arith.constant 0 : index
    %c0_1 = arith.constant 0 : index
    %0 = vector.load %arg1[%c0, %c0_0, %c0_1] : memref<8x32x128xf32, #tpu.memory_space<vmem>>, vector<8x32x128xf32>
    %1 = vector.shape_cast %0 : vector<8x32x128xf32> to vector<256x128xf32>
    %c0_2 = arith.constant 0 : index
    %c0_3 = arith.constant 0 : index
    %2 = vector.load %arg5[%c0_2, %c0_3] : memref<128x128xf32, #tpu.memory_space<vmem>>, vector<128x128xf32>
    %cst = arith.constant dense<0.000000e+00> : vector<256x128xf32>
    %3 = tpu.matmul %1, %2, %cst {dimension_numbers = #tpu.dot_dimension_numbers<[1], [0], [0], [1], [0, 0, 1, 1], [], []>} : vector<256x128xf32>, vector<128x128xf32>, vector<256x128xf32> -> vector<256x128xf32>
    %c0_4 = arith.constant 0 : index
    %c0_5 = arith.constant 0 : index
    %4 = vector.load %arg6[%c0_4, %c0_5] : memref<1x128xf32, #tpu.memory_space<vmem>>, vector<1x128xf32>
    %5 = vector.broadcast %4 : vector<1x128xf32> to vector<256x128xf32>
    %6 = arith.addf %3, %5 : vector<256x128xf32>
    %c0_6 = arith.constant 0 : index
    %c0_7 = arith.constant 0 : index
    %7 = vector.load %arg7[%c0_6, %c0_7] : memref<32x32xf32, #tpu.memory_space<vmem>>, vector<32x32xf32>
    %c0_8 = arith.constant 0 : index
    %c0_9 = arith.constant 0 : index
    %c0_10 = arith.constant 0 : index
    %8 = vector.load %arg2[%c0_8, %c0_9, %c0_10] : memref<1x32x1024xf32, #tpu.memory_space<vmem>>, vector<1x32x1024xf32>
    %9 = vector.shape_cast %8 : vector<1x32x1024xf32> to vector<32x1024xf32>
    %cst_11 = arith.constant dense<0.000000e+00> : vector<32x1024xf32>
    %10 = tpu.matmul %7, %9, %cst_11 {dimension_numbers = #tpu.dot_dimension_numbers<[1], [0], [0], [1], [0, 0, 1, 1], [], []>} : vector<32x32xf32>, vector<32x1024xf32>, vector<32x1024xf32> -> vector<32x1024xf32>
    %c0_12 = arith.constant 0 : index
    %c0_13 = arith.constant 0 : index
    %11 = vector.load %arg8[%c0_12, %c0_13] : memref<32x1xf32, #tpu.memory_space<vmem>>, vector<32x1xf32>
    %12 = vector.broadcast %11 : vector<32x1xf32> to vector<32x1024xf32>
    %13 = arith.addf %10, %12 : vector<32x1024xf32>
    %c0_14 = arith.constant 0 : index
    %c0_15 = arith.constant 0 : index
    %14 = vector.load %arg9[%c0_14, %c0_15] : memref<128x128xf32, #tpu.memory_space<vmem>>, vector<128x128xf32>
    %15 = vector.extract_strided_slice %13 {offsets = [0, 0], sizes = [32, 128], strides = [1, 1]} : vector<32x1024xf32> to vector<32x128xf32>
    %16 = tpu.concatenate %15, %15, %15, %15 in 0 : vector<32x128xf32>, vector<32x128xf32>, vector<32x128xf32>, vector<32x128xf32> -> vector<128x128xf32>
    %17 = arith.mulf %14, %16 : vector<128x128xf32>
    %c0_16 = arith.constant 0 : index
    %c0_17 = arith.constant 0 : index
    %c0_18 = arith.constant 0 : index
    %18 = vector.load %arg3[%c0_16, %c0_17, %c0_18] : memref<8x32x128xf32, #tpu.memory_space<vmem>>, vector<1x32x128xf32>
    %19 = vector.shape_cast %18 : vector<1x32x128xf32> to vector<32x128xf32>
    %cst_19 = arith.constant dense<0.000000e+00> : vector<32x128xf32>
    %20 = tpu.matmul %19, %17, %cst_19 {dimension_numbers = #tpu.dot_dimension_numbers<[1], [0], [0], [1], [0, 0, 1, 1], [], []>} : vector<32x128xf32>, vector<128x128xf32>, vector<32x128xf32> -> vector<32x128xf32>
    %21 = vector.extract_strided_slice %6 {offsets = [0, 0], sizes = [32, 128], strides = [1, 1]} : vector<256x128xf32> to vector<32x128xf32>
    %22 = arith.addf %20, %21 : vector<32x128xf32>
    %c0_20 = arith.constant 0 : index
    %c0_21 = arith.constant 0 : index
    %c0_22 = arith.constant 0 : index
    %23 = vector.load %arg4[%c0_20, %c0_21, %c0_22] : memref<8x1x128xf32, #tpu.memory_space<vmem>>, vector<1x1x128xf32>
    %24 = vector.shape_cast %23 : vector<1x1x128xf32> to vector<1x128xf32>
    %25 = vector.broadcast %24 : vector<1x128xf32> to vector<32x128xf32>
    %26 = arith.divf %22, %25 : vector<32x128xf32>
    %c0_23 = arith.constant 0 : index
    %c0_24 = arith.constant 0 : index
    %c0_25 = arith.constant 0 : index
    %27 = vector.load %arg10[%c0_23, %c0_24, %c0_25] : memref<8x32x128xf32, #tpu.memory_space<vmem>>, vector<1x32x128xf32>
    %28 = vector.shape_cast %27 : vector<1x32x128xf32> to vector<32x128xf32>
    %29 = vector.shape_cast %26 : vector<32x128xf32> to vector<1x32x128xf32>
    tpu.vector_store %arg10[%c0_23, %c0_24, %c0_25], %29 {strides = array<i32>} : memref<8x32x128xf32, #tpu.memory_space<vmem>>, vector<1x32x128xf32>,
    %30 = vector.extract_strided_slice %13 {offsets = [0, 128], sizes = [32, 128], strides = [1, 1]} : vector<32x1024xf32> to vector<32x128xf32>
    %31 = tpu.concatenate %30, %30, %30, %30 in 0 : vector<32x128xf32>, vector<32x128xf32>, vector<32x128xf32>, vector<32x128xf32> -> vector<128x128xf32>
    %32 = arith.mulf %14, %31 : vector<128x128xf32>
    %c1 = arith.constant 1 : index
    %c0_26 = arith.constant 0 : index
    %c0_27 = arith.constant 0 : index
    %33 = vector.load %arg3[%c1, %c0_26, %c0_27] : memref<8x32x128xf32, #tpu.memory_space<vmem>>, vector<1x32x128xf32>
    %34 = vector.shape_cast %33 : vector<1x32x128xf32> to vector<32x128xf32>
    %cst_28 = arith.constant dense<0.000000e+00> : vector<32x128xf32>
    %35 = tpu.matmul %34, %32, %cst_28 {dimension_numbers = #tpu.dot_dimension_numbers<[1], [0], [0], [1], [0, 0, 1, 1], [], []>} : vector<32x128xf32>, vector<128x128xf32>, vector<32x128xf32> -> vector<32x128xf32>
    %36 = vector.extract_strided_slice %6 {offsets = [32, 0], sizes = [32, 128], strides = [1, 1]} : vector<256x128xf32> to vector<32x128xf32>
    %37 = arith.addf %35, %36 : vector<32x128xf32>
    %c1_29 = arith.constant 1 : index
    %c0_30 = arith.constant 0 : index
    %c0_31 = arith.constant 0 : index
    %38 = vector.load %arg4[%c1_29, %c0_30, %c0_31] : memref<8x1x128xf32, #tpu.memory_space<vmem>>, vector<1x1x128xf32>
    %39 = vector.shape_cast %38 : vector<1x1x128xf32> to vector<1x128xf32>
    %40 = vector.broadcast %39 : vector<1x128xf32> to vector<32x128xf32>
    %41 = arith.divf %37, %40 : vector<32x128xf32>
    %c1_32 = arith.constant 1 : index
    %c0_33 = arith.constant 0 : index
    %c0_34 = arith.constant 0 : index
    %42 = vector.load %arg10[%c1_32, %c0_33, %c0_34] : memref<8x32x128xf32, #tpu.memory_space<vmem>>, vector<1x32x128xf32>
    %43 = vector.shape_cast %42 : vector<1x32x128xf32> to vector<32x128xf32>
    %44 = vector.shape_cast %41 : vector<32x128xf32> to vector<1x32x128xf32>
    tpu.vector_store %arg10[%c1_32, %c0_33, %c0_34], %44 {strides = array<i32>} : memref<8x32x128xf32, #tpu.memory_space<vmem>>, vector<1x32x128xf32>,
    %45 = vector.extract_strided_slice %13 {offsets = [0, 256], sizes = [32, 128], strides = [1, 1]} : vector<32x1024xf32> to vector<32x128xf32>
    %46 = tpu.concatenate %45, %45, %45, %45 in 0 : vector<32x128xf32>, vector<32x128xf32>, vector<32x128xf32>, vector<32x128xf32> -> vector<128x128xf32>
    %47 = arith.mulf %14, %46 : vector<128x128xf32>
    %c2 = arith.constant 2 : index
    %c0_35 = arith.constant 0 : index
    %c0_36 = arith.constant 0 : index
    %48 = vector.load %arg3[%c2, %c0_35, %c0_36] : memref<8x32x128xf32, #tpu.memory_space<vmem>>, vector<1x32x128xf32>
    %49 = vector.shape_cast %48 : vector<1x32x128xf32> to vector<32x128xf32>
    %cst_37 = arith.constant dense<0.000000e+00> : vector<32x128xf32>
    %50 = tpu.matmul %49, %47, %cst_37 {dimension_numbers = #tpu.dot_dimension_numbers<[1], [0], [0], [1], [0, 0, 1, 1], [], []>} : vector<32x128xf32>, vector<128x128xf32>, vector<32x128xf32> -> vector<32x128xf32>
    %51 = vector.extract_strided_slice %6 {offsets = [64, 0], sizes = [32, 128], strides = [1, 1]} : vector<256x128xf32> to vector<32x128xf32>
    %52 = arith.addf %50, %51 : vector<32x128xf32>
    %c2_38 = arith.constant 2 : index
    %c0_39 = arith.constant 0 : index
    %c0_40 = arith.constant 0 : index
    %53 = vector.load %arg4[%c2_38, %c0_39, %c0_40] : memref<8x1x128xf32, #tpu.memory_space<vmem>>, vector<1x1x128xf32>
    %54 = vector.shape_cast %53 : vector<1x1x128xf32> to vector<1x128xf32>
    %55 = vector.broadcast %54 : vector<1x128xf32> to vector<32x128xf32>
    %56 = arith.divf %52, %55 : vector<32x128xf32>
    %c2_41 = arith.constant 2 : index
    %c0_42 = arith.constant 0 : index
    %c0_43 = arith.constant 0 : index
    %57 = vector.load %arg10[%c2_41, %c0_42, %c0_43] : memref<8x32x128xf32, #tpu.memory_space<vmem>>, vector<1x32x128xf32>
    %58 = vector.shape_cast %57 : vector<1x32x128xf32> to vector<32x128xf32>
    %59 = vector.shape_cast %56 : vector<32x128xf32> to vector<1x32x128xf32>
    tpu.vector_store %arg10[%c2_41, %c0_42, %c0_43], %59 {strides = array<i32>} : memref<8x32x128xf32, #tpu.memory_space<vmem>>, vector<1x32x128xf32>,
    %60 = vector.extract_strided_slice %13 {offsets = [0, 384], sizes = [32, 128], strides = [1, 1]} : vector<32x1024xf32> to vector<32x128xf32>
    %61 = tpu.concatenate %60, %60, %60, %60 in 0 : vector<32x128xf32>, vector<32x128xf32>, vector<32x128xf32>, vector<32x128xf32> -> vector<128x128xf32>
    %62 = arith.mulf %14, %61 : vector<128x128xf32>
    %c3 = arith.constant 3 : index
    %c0_44 = arith.constant 0 : index
    %c0_45 = arith.constant 0 : index
    %63 = vector.load %arg3[%c3, %c0_44, %c0_45] : memref<8x32x128xf32, #tpu.memory_space<vmem>>, vector<1x32x128xf32>
    %64 = vector.shape_cast %63 : vector<1x32x128xf32> to vector<32x128xf32>
    %cst_46 = arith.constant dense<0.000000e+00> : vector<32x128xf32>
    %65 = tpu.matmul %64, %62, %cst_46 {dimension_numbers = #tpu.dot_dimension_numbers<[1], [0], [0], [1], [0, 0, 1, 1], [], []>} : vector<32x128xf32>, vector<128x128xf32>, vector<32x128xf32> -> vector<32x128xf32>
    %66 = vector.extract_strided_slice %6 {offsets = [96, 0], sizes = [32, 128], strides = [1, 1]} : vector<256x128xf32> to vector<32x128xf32>
    %67 = arith.addf %65, %66 : vector<32x128xf32>
    %c3_47 = arith.constant 3 : index
    %c0_48 = arith.constant 0 : index
    %c0_49 = arith.constant 0 : index
    %68 = vector.load %arg4[%c3_47, %c0_48, %c0_49] : memref<8x1x128xf32, #tpu.memory_space<vmem>>, vector<1x1x128xf32>
    %69 = vector.shape_cast %68 : vector<1x1x128xf32> to vector<1x128xf32>
    %70 = vector.broadcast %69 : vector<1x128xf32> to vector<32x128xf32>
    %71 = arith.divf %67, %70 : vector<32x128xf32>
    %c3_50 = arith.constant 3 : index
    %c0_51 = arith.constant 0 : index
    %c0_52 = arith.constant 0 : index
    %72 = vector.load %arg10[%c3_50, %c0_51, %c0_52] : memref<8x32x128xf32, #tpu.memory_space<vmem>>, vector<1x32x128xf32>
    %73 = vector.shape_cast %72 : vector<1x32x128xf32> to vector<32x128xf32>
    %74 = vector.shape_cast %71 : vector<32x128xf32> to vector<1x32x128xf32>
    tpu.vector_store %arg10[%c3_50, %c0_51, %c0_52], %74 {strides = array<i32>} : memref<8x32x128xf32, #tpu.memory_space<vmem>>, vector<1x32x128xf32>,
    %75 = vector.extract_strided_slice %13 {offsets = [0, 512], sizes = [32, 128], strides = [1, 1]} : vector<32x1024xf32> to vector<32x128xf32>
    %76 = tpu.concatenate %75, %75, %75, %75 in 0 : vector<32x128xf32>, vector<32x128xf32>, vector<32x128xf32>, vector<32x128xf32> -> vector<128x128xf32>
    %77 = arith.mulf %14, %76 : vector<128x128xf32>
    %c4 = arith.constant 4 : index
    %c0_53 = arith.constant 0 : index
    %c0_54 = arith.constant 0 : index
    %78 = vector.load %arg3[%c4, %c0_53, %c0_54] : memref<8x32x128xf32, #tpu.memory_space<vmem>>, vector<1x32x128xf32>
    %79 = vector.shape_cast %78 : vector<1x32x128xf32> to vector<32x128xf32>
    %cst_55 = arith.constant dense<0.000000e+00> : vector<32x128xf32>
    %80 = tpu.matmul %79, %77, %cst_55 {dimension_numbers = #tpu.dot_dimension_numbers<[1], [0], [0], [1], [0, 0, 1, 1], [], []>} : vector<32x128xf32>, vector<128x128xf32>, vector<32x128xf32> -> vector<32x128xf32>
    %81 = vector.extract_strided_slice %6 {offsets = [128, 0], sizes = [32, 128], strides = [1, 1]} : vector<256x128xf32> to vector<32x128xf32>
    %82 = arith.addf %80, %81 : vector<32x128xf32>
    %c4_56 = arith.constant 4 : index
    %c0_57 = arith.constant 0 : index
    %c0_58 = arith.constant 0 : index
    %83 = vector.load %arg4[%c4_56, %c0_57, %c0_58] : memref<8x1x128xf32, #tpu.memory_space<vmem>>, vector<1x1x128xf32>
    %84 = vector.shape_cast %83 : vector<1x1x128xf32> to vector<1x128xf32>
    %85 = vector.broadcast %84 : vector<1x128xf32> to vector<32x128xf32>
    %86 = arith.divf %82, %85 : vector<32x128xf32>
    %c4_59 = arith.constant 4 : index
    %c0_60 = arith.constant 0 : index
    %c0_61 = arith.constant 0 : index
    %87 = vector.load %arg10[%c4_59, %c0_60, %c0_61] : memref<8x32x128xf32, #tpu.memory_space<vmem>>, vector<1x32x128xf32>
    %88 = vector.shape_cast %87 : vector<1x32x128xf32> to vector<32x128xf32>
    %89 = vector.shape_cast %86 : vector<32x128xf32> to vector<1x32x128xf32>
    tpu.vector_store %arg10[%c4_59, %c0_60, %c0_61], %89 {strides = array<i32>} : memref<8x32x128xf32, #tpu.memory_space<vmem>>, vector<1x32x128xf32>,
    %90 = vector.extract_strided_slice %13 {offsets = [0, 640], sizes = [32, 128], strides = [1, 1]} : vector<32x1024xf32> to vector<32x128xf32>
    %91 = tpu.concatenate %90, %90, %90, %90 in 0 : vector<32x128xf32>, vector<32x128xf32>, vector<32x128xf32>, vector<32x128xf32> -> vector<128x128xf32>
    %92 = arith.mulf %14, %91 : vector<128x128xf32>
    %c5 = arith.constant 5 : index
    %c0_62 = arith.constant 0 : index
    %c0_63 = arith.constant 0 : index
    %93 = vector.load %arg3[%c5, %c0_62, %c0_63] : memref<8x32x128xf32, #tpu.memory_space<vmem>>, vector<1x32x128xf32>
    %94 = vector.shape_cast %93 : vector<1x32x128xf32> to vector<32x128xf32>
    %cst_64 = arith.constant dense<0.000000e+00> : vector<32x128xf32>
    %95 = tpu.matmul %94, %92, %cst_64 {dimension_numbers = #tpu.dot_dimension_numbers<[1], [0], [0], [1], [0, 0, 1, 1], [], []>} : vector<32x128xf32>, vector<128x128xf32>, vector<32x128xf32> -> vector<32x128xf32>
    %96 = vector.extract_strided_slice %6 {offsets = [160, 0], sizes = [32, 128], strides = [1, 1]} : vector<256x128xf32> to vector<32x128xf32>
    %97 = arith.addf %95, %96 : vector<32x128xf32>
    %c5_65 = arith.constant 5 : index
    %c0_66 = arith.constant 0 : index
    %c0_67 = arith.constant 0 : index
    %98 = vector.load %arg4[%c5_65, %c0_66, %c0_67] : memref<8x1x128xf32, #tpu.memory_space<vmem>>, vector<1x1x128xf32>
    %99 = vector.shape_cast %98 : vector<1x1x128xf32> to vector<1x128xf32>
    %100 = vector.broadcast %99 : vector<1x128xf32> to vector<32x128xf32>
    %101 = arith.divf %97, %100 : vector<32x128xf32>
    %c5_68 = arith.constant 5 : index
    %c0_69 = arith.constant 0 : index
    %c0_70 = arith.constant 0 : index
    %102 = vector.load %arg10[%c5_68, %c0_69, %c0_70] : memref<8x32x128xf32, #tpu.memory_space<vmem>>, vector<1x32x128xf32>
    %103 = vector.shape_cast %102 : vector<1x32x128xf32> to vector<32x128xf32>
    %104 = vector.shape_cast %101 : vector<32x128xf32> to vector<1x32x128xf32>
    tpu.vector_store %arg10[%c5_68, %c0_69, %c0_70], %104 {strides = array<i32>} : memref<8x32x128xf32, #tpu.memory_space<vmem>>, vector<1x32x128xf32>,
    %105 = vector.extract_strided_slice %13 {offsets = [0, 768], sizes = [32, 128], strides = [1, 1]} : vector<32x1024xf32> to vector<32x128xf32>
    %106 = tpu.concatenate %105, %105, %105, %105 in 0 : vector<32x128xf32>, vector<32x128xf32>, vector<32x128xf32>, vector<32x128xf32> -> vector<128x128xf32>
    %107 = arith.mulf %14, %106 : vector<128x128xf32>
    %c6 = arith.constant 6 : index
    %c0_71 = arith.constant 0 : index
    %c0_72 = arith.constant 0 : index
    %108 = vector.load %arg3[%c6, %c0_71, %c0_72] : memref<8x32x128xf32, #tpu.memory_space<vmem>>, vector<1x32x128xf32>
    %109 = vector.shape_cast %108 : vector<1x32x128xf32> to vector<32x128xf32>
    %cst_73 = arith.constant dense<0.000000e+00> : vector<32x128xf32>
    %110 = tpu.matmul %109, %107, %cst_73 {dimension_numbers = #tpu.dot_dimension_numbers<[1], [0], [0], [1], [0, 0, 1, 1], [], []>} : vector<32x128xf32>, vector<128x128xf32>, vector<32x128xf32> -> vector<32x128xf32>
    %111 = vector.extract_strided_slice %6 {offsets = [192, 0], sizes = [32, 128], strides = [1, 1]} : vector<256x128xf32> to vector<32x128xf32>
    %112 = arith.addf %110, %111 : vector<32x128xf32>
    %c6_74 = arith.constant 6 : index
    %c0_75 = arith.constant 0 : index
    %c0_76 = arith.constant 0 : index
    %113 = vector.load %arg4[%c6_74, %c0_75, %c0_76] : memref<8x1x128xf32, #tpu.memory_space<vmem>>, vector<1x1x128xf32>
    %114 = vector.shape_cast %113 : vector<1x1x128xf32> to vector<1x128xf32>
    %115 = vector.broadcast %114 : vector<1x128xf32> to vector<32x128xf32>
    %116 = arith.divf %112, %115 : vector<32x128xf32>
    %c6_77 = arith.constant 6 : index
    %c0_78 = arith.constant 0 : index
    %c0_79 = arith.constant 0 : index
    %117 = vector.load %arg10[%c6_77, %c0_78, %c0_79] : memref<8x32x128xf32, #tpu.memory_space<vmem>>, vector<1x32x128xf32>
    %118 = vector.shape_cast %117 : vector<1x32x128xf32> to vector<32x128xf32>
    %119 = vector.shape_cast %116 : vector<32x128xf32> to vector<1x32x128xf32>
    tpu.vector_store %arg10[%c6_77, %c0_78, %c0_79], %119 {strides = array<i32>} : memref<8x32x128xf32, #tpu.memory_space<vmem>>, vector<1x32x128xf32>,
    %120 = vector.extract_strided_slice %13 {offsets = [0, 896], sizes = [32, 128], strides = [1, 1]} : vector<32x1024xf32> to vector<32x128xf32>
    %121 = tpu.concatenate %120, %120, %120, %120 in 0 : vector<32x128xf32>, vector<32x128xf32>, vector<32x128xf32>, vector<32x128xf32> -> vector<128x128xf32>
    %122 = arith.mulf %14, %121 : vector<128x128xf32>
    %c7 = arith.constant 7 : index
    %c0_80 = arith.constant 0 : index
    %c0_81 = arith.constant 0 : index
    %123 = vector.load %arg3[%c7, %c0_80, %c0_81] : memref<8x32x128xf32, #tpu.memory_space<vmem>>, vector<1x32x128xf32>
    %124 = vector.shape_cast %123 : vector<1x32x128xf32> to vector<32x128xf32>
    %cst_82 = arith.constant dense<0.000000e+00> : vector<32x128xf32>
    %125 = tpu.matmul %124, %122, %cst_82 {dimension_numbers = #tpu.dot_dimension_numbers<[1], [0], [0], [1], [0, 0, 1, 1], [], []>} : vector<32x128xf32>, vector<128x128xf32>, vector<32x128xf32> -> vector<32x128xf32>
    %126 = vector.extract_strided_slice %6 {offsets = [224, 0], sizes = [32, 128], strides = [1, 1]} : vector<256x128xf32> to vector<32x128xf32>
    %127 = arith.addf %125, %126 : vector<32x128xf32>
    %c7_83 = arith.constant 7 : index
    %c0_84 = arith.constant 0 : index
    %c0_85 = arith.constant 0 : index
    %128 = vector.load %arg4[%c7_83, %c0_84, %c0_85] : memref<8x1x128xf32, #tpu.memory_space<vmem>>, vector<1x1x128xf32>
    %129 = vector.shape_cast %128 : vector<1x1x128xf32> to vector<1x128xf32>
    %130 = vector.broadcast %129 : vector<1x128xf32> to vector<32x128xf32>
    %131 = arith.divf %127, %130 : vector<32x128xf32>
    %c7_86 = arith.constant 7 : index
    %c0_87 = arith.constant 0 : index
    %c0_88 = arith.constant 0 : index
    %132 = vector.load %arg10[%c7_86, %c0_87, %c0_88] : memref<8x32x128xf32, #tpu.memory_space<vmem>>, vector<1x32x128xf32>
    %133 = vector.shape_cast %132 : vector<1x32x128xf32> to vector<32x128xf32>
    %134 = vector.shape_cast %131 : vector<32x128xf32> to vector<1x32x128xf32>
    tpu.vector_store %arg10[%c7_86, %c0_87, %c0_88], %134 {strides = array<i32>} : memref<8x32x128xf32, #tpu.memory_space<vmem>>, vector<1x32x128xf32>,
    return
  }
  func.func @transform_0(%arg0: i32) -> (i32, i32, i32) {
    %c0_i32 = arith.constant 0 : i32
    %c0_i32_0 = arith.constant 0 : i32
    %c0_i32_1 = arith.constant 0 : i32
    return %arg0, %c0_i32, %c0_i32_0 : i32, i32, i32
  }
  func.func @transform_1(%arg0: i32) -> (i32, i32, i32) {
    %c0_i32 = arith.constant 0 : i32
    %c0_i32_0 = arith.constant 0 : i32
    %c0_i32_1 = arith.constant 0 : i32
    return %arg0, %c0_i32, %c0_i32_0 : i32, i32, i32
  }
  func.func @transform_2(%arg0: i32) -> (i32, i32, i32) {
    %c0_i32 = arith.constant 0 : i32
    %c0_i32_0 = arith.constant 0 : i32
    %c0_i32_1 = arith.constant 0 : i32
    return %arg0, %c0_i32, %c0_i32_0 : i32, i32, i32
  }
  func.func @transform_3(%arg0: i32) -> (i32, i32, i32) {
    %c0_i32 = arith.constant 0 : i32
    %c0_i32_0 = arith.constant 0 : i32
    %c0_i32_1 = arith.constant 0 : i32
    return %arg0, %c0_i32, %c0_i32_0 : i32, i32, i32
  }
  func.func @transform_4(%arg0: i32) -> (i32, i32) {
    %c0_i32 = arith.constant 0 : i32
    %c0_i32_0 = arith.constant 0 : i32
    %c0_i32_1 = arith.constant 0 : i32
    return %c0_i32, %c0_i32_0 : i32, i32
  }
  func.func @transform_5(%arg0: i32) -> (i32, i32) {
    %c0_i32 = arith.constant 0 : i32
    %c0_i32_0 = arith.constant 0 : i32
    %c0_i32_1 = arith.constant 0 : i32
    return %c0_i32, %c0_i32_0 : i32, i32
  }
  func.func @transform_6(%arg0: i32) -> (i32, i32) {
    %c0_i32 = arith.constant 0 : i32
    %c0_i32_0 = arith.constant 0 : i32
    %c0_i32_1 = arith.constant 0 : i32
    return %c0_i32, %c0_i32_0 : i32, i32
  }
  func.func @transform_7(%arg0: i32) -> (i32, i32) {
    %c0_i32 = arith.constant 0 : i32
    %c0_i32_0 = arith.constant 0 : i32
    %c0_i32_1 = arith.constant 0 : i32
    return %c0_i32, %c0_i32_0 : i32, i32
  }
  func.func @transform_8(%arg0: i32) -> (i32, i32) {
    %c0_i32 = arith.constant 0 : i32
    %c0_i32_0 = arith.constant 0 : i32
    %c0_i32_1 = arith.constant 0 : i32
    return %c0_i32, %c0_i32_0 : i32, i32
  }
  func.func @transform_9(%arg0: i32) -> (i32, i32, i32) {
    %c0_i32 = arith.constant 0 : i32
    %c0_i32_0 = arith.constant 0 : i32
    %c0_i32_1 = arith.constant 0 : i32
    return %arg0, %c0_i32, %c0_i32_0 : i32, i32, i32
  }
}

</mosaic_0001>

<llo_original>
// kernel: tpu_custom_call.1
$region0: #{tpu_custom_call.1}
  #allocation0 [shape = 'u32[]', space=smem, size = 0x4, offset = 0x4, fixed_abs, tag = 'smem constant byte address 0x4 - core index']
  #allocation1 [shape = 'u32[144,128]{1,0:T(1,128)}', space=vmem, size = 0x12000, scoped, tag = 'internal scratch']
  %s0 = inlined_call_operand.hbm [shape: f32[16,32,128], index: 0, kind: input, shape index: {}]
  %s1 = inlined_call_operand.hbm [shape: f32[2,32,1024], index: 1, kind: input, shape index: {}]
  %s2 = inlined_call_operand.hbm [shape: f32[16,32,128], index: 2, kind: input, shape index: {}]
  %s3 = inlined_call_operand.vmem [shape: f32[16,1,128], index: 3, kind: input, shape index: {}]
  %s4 = inlined_call_operand.hbm [shape: f32[128,128], index: 4, kind: input, shape index: {}]
  %s5 = inlined_call_operand.vmem [shape: f32[1,128], index: 5, kind: input, shape index: {}]
  %s6 = inlined_call_operand.vmem [shape: f32[32,32], index: 6, kind: input, shape index: {}]
  %s7 = inlined_call_operand.vmem [shape: f32[32,1], index: 7, kind: input, shape index: {}]
  %s8 = inlined_call_operand.hbm [shape: f32[128,128], index: 8, kind: input, shape index: {}]
  %s9 = inlined_call_operand.hbm [shape: f32[16,32,128], index: 9, kind: output, shape index: {}]
  %s10 = sld [smem:[#allocation0]]
  $region89: #{tpu_custom_call.1} parent=0
    _
  %s12 = ssub.s32 1, %s10
  %s13 = scalar_select 0, %s12, %s10
  $region1: #{tpu_custom_call.1} parent=0
    #allocation2 [shape = 'u8[262144]{0}', space=vmem, size = 0x40000, scoped, tag = 'input window, operand 0']
    #allocation3 [shape = 's32[2]{0}', space=sflag, size = 0x8, scoped, tag = 'scoped memory for tpu_custom_call.1']
    #allocation4 [shape = 's32[2]{0}', space=sflag, size = 0x8, scoped, tag = 'scoped memory for tpu_custom_call.1']
    #allocation5 [shape = 'u8[262144]{0}', space=vmem, size = 0x40000, scoped, tag = 'input window, operand 1']
    #allocation6 [shape = 's32[2]{0}', space=sflag, size = 0x8, scoped, tag = 'scoped memory for tpu_custom_call.1']
    #allocation7 [shape = 'u8[262144]{0}', space=vmem, size = 0x40000, scoped, tag = 'input window, operand 2']
    #allocation8 [shape = 'u8[65536]{0}', space=vmem, size = 0x10000, scoped, tag = 'input window, operand 4, single buffered']
    #allocation9 [shape = 's32[1]{0}', space=sflag, size = 0x4, scoped, tag = 'scoped memory for tpu_custom_call.1']
    #allocation10 [shape = 'u8[65536]{0}', space=vmem, size = 0x10000, scoped, tag = 'input window, operand 8, single buffered']
    #allocation11 [shape = 'u8[262144]{0}', space=vmem, size = 0x40000, scoped, tag = 'output window, operand 0']
    %14 = vsyncpa [#allocation3], 0
    %s15 = scalar_lea.sflag [#allocation3], 1
    %16 = vsyncpa %s15, 0
    %17 = vsyncpa [#allocation6], 0
    %s18 = scalar_lea.sflag [#allocation6], 1
    %19 = vsyncpa %s18, 0
    %20 = vsyncpa [#allocation9], 0
    %21 = vsyncpa [#allocation4], 0
    %s22 = scalar_lea.sflag [#allocation4], 1
    %23 = vsyncpa %s22, 0
    loop: start=0, step=1, limit=4
    $region2: #{tpu_custom_call.1} parent=1 // loop_pre_header
      _
    $region3: #{tpu_custom_call.1} parent=1 // loop_header
      %s25 = sphi 0, %s29
      %p26 = scmp.ge.s32.totalorder %s25, 4
      %s35 = sphi 0, %s37
      %s38 = sphi 0, %s35
      %s39 = sphi 0, %s38
      %s55 = sphi 0, %s39
      %s61 = sphi 0, %s63
      %s64 = sphi 0, %s61
      %s65 = sphi 0, %s64
      %s81 = sphi 0, %s65
      %s87 = sphi 0, %s89
      %s90 = sphi 0, %s87
      %s91 = sphi 0, %s90
      %s107 = sphi 0, %s91
      %s113 = sphi 0, %s115
      %s116 = sphi 0, %s113
      %s117 = sphi 0, %s116
      %s133 = sphi 0, %s117
      %s137 = sphi 0, %s137
      %s139 = sphi 0, %s137
      %s140 = sphi 0, %s139
      %s154 = sphi 0, %s140
      %s158 = sphi 0, %s158
      %s160 = sphi 0, %s158
      %s161 = sphi 0, %s160
      %s175 = sphi 0, %s161
      %s179 = sphi 0, %s179
      %s181 = sphi 0, %s179
      %s182 = sphi 0, %s181
      %s196 = sphi 0, %s182
      %s200 = sphi 0, %s200
      %s202 = sphi 0, %s200
      %s203 = sphi 0, %s202
      %s217 = sphi 0, %s203
      %s221 = sphi 0, %s221
      %s223 = sphi 0, %s221
      %s224 = sphi 0, %s223
      %s238 = sphi 0, %s224
      %s244 = sphi 0, %s246
      %s247 = sphi 0, %s244
      %s248 = sphi 0, %s247
      %s264 = sphi 0, %s248
    $region4: #{tpu_custom_call.1} parent=1 // loop_header_branch
      %28 = sbr.rel (%p26) target = $region8
    $region5: #{tpu_custom_call.1} parent=1 // loop_body
      %s30 = ssub.s32 %s25, 1
      %s31 = ssub.s32 %s25, 2
      %s32 = sadd.s32 %s25, 1
      %s33 = ssub.s32 %s25, %s32
      %p34 = scmp.eq.s32.totalorder %s33, 0
      %s36 = sadd.s32 %s35, 1
      %s37 = scalar_select %p34, %s35, %s36
      %p40 = pneg %p34
      %p41 = scmp.eq.s32.totalorder %s25, 1
      %p42 = por %p40, %p41
      %p43 = scmp.ne.s32.totalorder %s35, %s38
      %p44 = scmp.eq.s32.totalorder %s25, 0
      %p45 = por %p43, %p44
      %p46 = scmp.ne.s32.totalorder %s35, %s38
      %p47 = scmp.eq.s32.totalorder %s30, 1
      %p48 = por %p46, %p47
      %p49 = scmp.ne.s32.totalorder %s38, %s39
      %p50 = scmp.eq.s32.totalorder %s30, 0
      %p51 = por %p49, %p50
      %p52 = scmp.ne.s32.totalorder %s38, %s39
      %p53 = scmp.eq.s32.totalorder %s31, 1
      %p54 = por %p52, %p53
      %p56 = scmp.ne.s32.totalorder %s39, %s55
      %p57 = scmp.eq.s32.totalorder %s31, 0
      %p58 = por %p56, %p57
      %s59 = ssub.s32 %s25, %s32
      %p60 = scmp.eq.s32.totalorder %s59, 0
      %s62 = sadd.s32 %s61, 1
      %s63 = scalar_select %p60, %s61, %s62
      %p66 = pneg %p60
      %p67 = scmp.eq.s32.totalorder %s25, 1
      %p68 = por %p66, %p67
      %p69 = scmp.ne.s32.totalorder %s61, %s64
      %p70 = scmp.eq.s32.totalorder %s25, 0
      %p71 = por %p69, %p70
      %p72 = scmp.ne.s32.totalorder %s61, %s64
      %p73 = scmp.eq.s32.totalorder %s30, 1
      %p74 = por %p72, %p73
      %p75 = scmp.ne.s32.totalorder %s64, %s65
      %p76 = scmp.eq.s32.totalorder %s30, 0
      %p77 = por %p75, %p76
      %p78 = scmp.ne.s32.totalorder %s64, %s65
      %p79 = scmp.eq.s32.totalorder %s31, 1
      %p80 = por %p78, %p79
      %p82 = scmp.ne.s32.totalorder %s65, %s81
      %p83 = scmp.eq.s32.totalorder %s31, 0
      %p84 = por %p82, %p83
      %s85 = ssub.s32 %s25, %s32
      %p86 = scmp.eq.s32.totalorder %s85, 0
      %s88 = sadd.s32 %s87, 1
      %s89 = scalar_select %p86, %s87, %s88
      %p92 = pneg %p86
      %p93 = scmp.eq.s32.totalorder %s25, 1
      %p94 = por %p92, %p93
      %p95 = scmp.ne.s32.totalorder %s87, %s90
      %p96 = scmp.eq.s32.totalorder %s25, 0
      %p97 = por %p95, %p96
      %p98 = scmp.ne.s32.totalorder %s87, %s90
      %p99 = scmp.eq.s32.totalorder %s30, 1
      %p100 = por %p98, %p99
      %p101 = scmp.ne.s32.totalorder %s90, %s91
      %p102 = scmp.eq.s32.totalorder %s30, 0
      %p103 = por %p101, %p102
      %p104 = scmp.ne.s32.totalorder %s90, %s91
      %p105 = scmp.eq.s32.totalorder %s31, 1
      %p106 = por %p104, %p105
      %p108 = scmp.ne.s32.totalorder %s91, %s107
      %p109 = scmp.eq.s32.totalorder %s31, 0
      %p110 = por %p108, %p109
      %s111 = ssub.s32 %s25, %s32
      %p112 = scmp.eq.s32.totalorder %s111, 0
      %s114 = sadd.s32 %s113, 1
      %s115 = scalar_select %p112, %s113, %s114
      %p118 = pneg %p112
      %p119 = scmp.eq.s32.totalorder %s25, 1
      %p120 = por %p118, %p119
      %p121 = scmp.ne.s32.totalorder %s113, %s116
      %p122 = scmp.eq.s32.totalorder %s25, 0
      %p123 = por %p121, %p122
      %p124 = scmp.ne.s32.totalorder %s113, %s116
      %p125 = scmp.eq.s32.totalorder %s30, 1
      %p126 = por %p124, %p125
      %p127 = scmp.ne.s32.totalorder %s116, %s117
      %p128 = scmp.eq.s32.totalorder %s30, 0
      %p129 = por %p127, %p128
      %p130 = scmp.ne.s32.totalorder %s116, %s117
      %p131 = scmp.eq.s32.totalorder %s31, 1
      %p132 = por %p130, %p131
      %p134 = scmp.ne.s32.totalorder %s117, %s133
      %p135 = scmp.eq.s32.totalorder %s31, 0
      %p136 = por %p134, %p135
      %s138 = sadd.s32 %s137, 1
      %p141 = scmp.eq.s32.totalorder %s25, 1
      %p142 = scmp.ne.s32.totalorder %s137, %s139
      %p143 = scmp.eq.s32.totalorder %s25, 0
      %p144 = por %p142, %p143
      %p145 = scmp.ne.s32.totalorder %s137, %s139
      %p146 = scmp.eq.s32.totalorder %s30, 1
      %p147 = por %p145, %p146
      %p148 = scmp.ne.s32.totalorder %s139, %s140
      %p149 = scmp.eq.s32.totalorder %s30, 0
      %p150 = por %p148, %p149
      %p151 = scmp.ne.s32.totalorder %s139, %s140
      %p152 = scmp.eq.s32.totalorder %s31, 1
      %p153 = por %p151, %p152
      %p155 = scmp.ne.s32.totalorder %s140, %s154
      %p156 = scmp.eq.s32.totalorder %s31, 0
      %p157 = por %p155, %p156
      %s159 = sadd.s32 %s158, 1
      %p162 = scmp.eq.s32.totalorder %s25, 1
      %p163 = scmp.ne.s32.totalorder %s158, %s160
      %p164 = scmp.eq.s32.totalorder %s25, 0
      %p165 = por %p163, %p164
      %p166 = scmp.ne.s32.totalorder %s158, %s160
      %p167 = scmp.eq.s32.totalorder %s30, 1
      %p168 = por %p166, %p167
      %p169 = scmp.ne.s32.totalorder %s160, %s161
      %p170 = scmp.eq.s32.totalorder %s30, 0
      %p171 = por %p169, %p170
      %p172 = scmp.ne.s32.totalorder %s160, %s161
      %p173 = scmp.eq.s32.totalorder %s31, 1
      %p174 = por %p172, %p173
      %p176 = scmp.ne.s32.totalorder %s161, %s175
      %p177 = scmp.eq.s32.totalorder %s31, 0
      %p178 = por %p176, %p177
      %s180 = sadd.s32 %s179, 1
      %p183 = scmp.eq.s32.totalorder %s25, 1
      %p184 = scmp.ne.s32.totalorder %s179, %s181
      %p185 = scmp.eq.s32.totalorder %s25, 0
      %p186 = por %p184, %p185
      %p187 = scmp.ne.s32.totalorder %s179, %s181
      %p188 = scmp.eq.s32.totalorder %s30, 1
      %p189 = por %p187, %p188
      %p190 = scmp.ne.s32.totalorder %s181, %s182
      %p191 = scmp.eq.s32.totalorder %s30, 0
      %p192 = por %p190, %p191
      %p193 = scmp.ne.s32.totalorder %s181, %s182
      %p194 = scmp.eq.s32.totalorder %s31, 1
      %p195 = por %p193, %p194
      %p197 = scmp.ne.s32.totalorder %s182, %s196
      %p198 = scmp.eq.s32.totalorder %s31, 0
      %p199 = por %p197, %p198
      %s201 = sadd.s32 %s200, 1
      %p204 = scmp.eq.s32.totalorder %s25, 1
      %p205 = scmp.ne.s32.totalorder %s200, %s202
      %p206 = scmp.eq.s32.totalorder %s25, 0
      %p207 = por %p205, %p206
      %p208 = scmp.ne.s32.totalorder %s200, %s202
      %p209 = scmp.eq.s32.totalorder %s30, 1
      %p210 = por %p208, %p209
      %p211 = scmp.ne.s32.totalorder %s202, %s203
      %p212 = scmp.eq.s32.totalorder %s30, 0
      %p213 = por %p211, %p212
      %p214 = scmp.ne.s32.totalorder %s202, %s203
      %p215 = scmp.eq.s32.totalorder %s31, 1
      %p216 = por %p214, %p215
      %p218 = scmp.ne.s32.totalorder %s203, %s217
      %p219 = scmp.eq.s32.totalorder %s31, 0
      %p220 = por %p218, %p219
      %s222 = sadd.s32 %s221, 1
      %p225 = scmp.eq.s32.totalorder %s25, 1
      %p226 = scmp.ne.s32.totalorder %s221, %s223
      %p227 = scmp.eq.s32.totalorder %s25, 0
      %p228 = por %p226, %p227
      %p229 = scmp.ne.s32.totalorder %s221, %s223
      %p230 = scmp.eq.s32.totalorder %s30, 1
      %p231 = por %p229, %p230
      %p232 = scmp.ne.s32.totalorder %s223, %s224
      %p233 = scmp.eq.s32.totalorder %s30, 0
      %p234 = por %p232, %p233
      %p235 = scmp.ne.s32.totalorder %s223, %s224
      %p236 = scmp.eq.s32.totalorder %s31, 1
      %p237 = por %p235, %p236
      %p239 = scmp.ne.s32.totalorder %s224, %s238
      %p240 = scmp.eq.s32.totalorder %s31, 0
      %p241 = por %p239, %p240
      %s242 = ssub.s32 %s25, %s32
      %p243 = scmp.eq.s32.totalorder %s242, 0
      %s245 = sadd.s32 %s244, 1
      %s246 = scalar_select %p243, %s244, %s245
      %p249 = pneg %p243
      %p250 = scmp.eq.s32.totalorder %s25, 1
      %p251 = por %p249, %p250
      %p252 = scmp.ne.s32.totalorder %s244, %s247
      %p253 = scmp.eq.s32.totalorder %s25, 0
      %p254 = por %p252, %p253
      %p255 = scmp.ne.s32.totalorder %s244, %s247
      %p256 = scmp.eq.s32.totalorder %s30, 1
      %p257 = por %p255, %p256
      %p258 = scmp.ne.s32.totalorder %s247, %s248
      %p259 = scmp.eq.s32.totalorder %s30, 0
      %p260 = por %p258, %p259
      %p261 = scmp.ne.s32.totalorder %s247, %s248
      %p262 = scmp.eq.s32.totalorder %s31, 1
      %p263 = por %p261, %p262
      %p265 = scmp.ne.s32.totalorder %s248, %s264
      %p266 = scmp.eq.s32.totalorder %s31, 0
      %p267 = por %p265, %p266
      %p268 = scmp.le.s32.totalorder 1, %s25
      %p269 = scmp.lt.s32.totalorder %s25, 3
      %p270 = pnand %p268, %p269
      %p271 = pneg %p270
      // Predicated region
      $region9: #{tpu_custom_call.1} parent=5 // pred_check
        _
      $region10: #{tpu_custom_call.1} parent=5 // pred_check_branch
        %273 = sbr.rel (%p270) target = $region12
      $region11: #{tpu_custom_call.1} parent=5 // pred_region
        %s274 = ssub.s32 %s25, 1
        // Predicated region
        $region13: #{tpu_custom_call.1} parent=11 // pred_check
          %p275 = pneg %p150
        $region14: #{tpu_custom_call.1} parent=11 // pred_check_branch
          %277 = sbr.rel (%p275) target = $region16
        $region15: #{tpu_custom_call.1} parent=11 // pred_region
          %s279 = ssub.s32 2048, 2048
          %280 = vsyncadd [#allocation9], %s279
          %s281 = sshll.u32 [#allocation8], 4
          %s282 = int_to_ptr.vmem [resolvable:$true] %s281
          %287 = dma.hbm_to_vmem [thread:$0]  %s4, 2048, %s282, [#allocation9], 128, 128, 8
        $region16: #{tpu_custom_call.1} parent=11 // pred_fallthru
          _
        // Predicated region
        $region17: #{tpu_custom_call.1} parent=11 // pred_check
          %p288 = pneg %p171
        $region18: #{tpu_custom_call.1} parent=11 // pred_check_branch
          %290 = sbr.rel (%p288) target = $region20
        $region19: #{tpu_custom_call.1} parent=11 // pred_region
          _
        $region20: #{tpu_custom_call.1} parent=11 // pred_fallthru
          _
        // Predicated region
        $region21: #{tpu_custom_call.1} parent=11 // pred_check
          %p291 = pneg %p192
        $region22: #{tpu_custom_call.1} parent=11 // pred_check_branch
          %293 = sbr.rel (%p291) target = $region24
        $region23: #{tpu_custom_call.1} parent=11 // pred_region
          _
        $region24: #{tpu_custom_call.1} parent=11 // pred_fallthru
          _
        // Predicated region
        $region25: #{tpu_custom_call.1} parent=11 // pred_check
          %p294 = pneg %p213
        $region26: #{tpu_custom_call.1} parent=11 // pred_check_branch
          %296 = sbr.rel (%p294) target = $region28
        $region27: #{tpu_custom_call.1} parent=11 // pred_region
          _
        $region28: #{tpu_custom_call.1} parent=11 // pred_fallthru
          _
        // Predicated region
        $region29: #{tpu_custom_call.1} parent=11 // pred_check
          %p297 = pneg %p234
        $region30: #{tpu_custom_call.1} parent=11 // pred_check_branch
          %299 = sbr.rel (%p297) target = $region32
        $region31: #{tpu_custom_call.1} parent=11 // pred_region
          %s301 = ssub.s32 2048, 2048
          %302 = vsyncadd [#allocation9], %s301
          %s303 = sshll.u32 [#allocation10], 4
          %s304 = int_to_ptr.vmem [resolvable:$true] %s303
          %309 = dma.hbm_to_vmem [thread:$0]  %s8, 2048, %s304, [#allocation9], 128, 128, 8
        $region32: #{tpu_custom_call.1} parent=11 // pred_fallthru
          _
      $region12: #{tpu_custom_call.1} parent=5 // pred_fallthru
        _
      %p310 = scmp.lt.s32.totalorder %s25, 2
      // Predicated region
      $region33: #{tpu_custom_call.1} parent=5 // pred_check
        %p311 = pneg %p310
      $region34: #{tpu_custom_call.1} parent=5 // pred_check_branch
        %313 = sbr.rel (%p311) target = $region36
      $region35: #{tpu_custom_call.1} parent=5 // pred_region
        // Predicated region
        $region37: #{tpu_custom_call.1} parent=35 // pred_check
          %p314 = pneg %p45
        $region38: #{tpu_custom_call.1} parent=35 // pred_check_branch
          %316 = sbr.rel (%p314) target = $region40
        $region39: #{tpu_custom_call.1} parent=35 // pred_region
          %s317 = sand.u32 %s35, 1
          %s318 = scalar_lea.sflag [#allocation3], %s317
          %s319 = sand.u32 %s35, 1
          %s320 = smul.addr %s319, 256
          %s321 = scalar_lea.vmem [#allocation2], %s320
          %s322 = smul.u32 8, %s25
          %s324 = ssub.s32 4096, 4096
          %325 = vsyncadd %s318, %s324
          %s326 = smul.addr %s322, 4
          %s327 = smul.addr %s326, 128
          %s328 = scalar_lea.hbm %s0, %s327
          %s329 = sshll.u32 %s321, 4
          %s330 = int_to_ptr.vmem [resolvable:$true] %s329
          %335 = dma.hbm_to_vmem [thread:$0]  %s328, 4096, %s330, %s318, 128, 128, 8
        $region40: #{tpu_custom_call.1} parent=35 // pred_fallthru
          _
        // Predicated region
        $region41: #{tpu_custom_call.1} parent=35 // pred_check
          %p336 = pneg %p71
        $region42: #{tpu_custom_call.1} parent=35 // pred_check_branch
          %338 = sbr.rel (%p336) target = $region44
        $region43: #{tpu_custom_call.1} parent=35 // pred_region
          %s339 = sand.u32 %s25, 1
          %s340 = scalar_lea.sflag [#allocation6], %s339
          %s341 = sand.u32 %s61, 1
          %s342 = smul.addr %s341, 256
          %s343 = scalar_lea.vmem [#allocation5], %s342
          %s345 = ssub.s32 4096, 4096
          %346 = vsyncadd %s340, %s345
          %s347 = smul.addr %s25, 32
          %s348 = smul.addr %s347, 128
          %s349 = scalar_lea.hbm %s1, %s348
          %s350 = sshll.u32 %s343, 4
          %s351 = int_to_ptr.vmem [resolvable:$true] %s350
          %356 = dma.hbm_to_vmem [thread:$0]  %s349, 4096, %s351, %s340, 1024, 1024, 64
        $region44: #{tpu_custom_call.1} parent=35 // pred_fallthru
          _
        // Predicated region
        $region45: #{tpu_custom_call.1} parent=35 // pred_check
          %p357 = pneg %p97
        $region46: #{tpu_custom_call.1} parent=35 // pred_check_branch
          %359 = sbr.rel (%p357) target = $region48
        $region47: #{tpu_custom_call.1} parent=35 // pred_region
          %s360 = sand.u32 %s25, 1
          %s361 = scalar_lea.sflag [#allocation6], %s360
          %s362 = sand.u32 %s87, 1
          %s363 = smul.addr %s362, 256
          %s364 = scalar_lea.vmem [#allocation7], %s363
          %s365 = smul.u32 8, %s25
          %s367 = ssub.s32 4096, 4096
          %368 = vsyncadd %s361, %s367
          %s369 = smul.addr %s365, 4
          %s370 = smul.addr %s369, 128
          %s371 = scalar_lea.hbm %s2, %s370
          %s372 = sshll.u32 %s364, 4
          %s373 = int_to_ptr.vmem [resolvable:$true] %s372
          %378 = dma.hbm_to_vmem [thread:$0]  %s371, 4096, %s373, %s361, 128, 128, 8
        $region48: #{tpu_custom_call.1} parent=35 // pred_fallthru
          _
        // Predicated region
        $region49: #{tpu_custom_call.1} parent=35 // pred_check
          %p379 = pneg %p123
        $region50: #{tpu_custom_call.1} parent=35 // pred_check_branch
          %381 = sbr.rel (%p379) target = $region52
        $region51: #{tpu_custom_call.1} parent=35 // pred_region
          %s382 = smul.u32 8, %s25
          %p383 = scmp.lt.s32.totalorder %s382, 15
          %s384 = scalar_select %p383, %s382, 15
          %s385 = scalar_lea.vmem %s3, %s384
          %s386 = smul.u32 8, %s25
        $region52: #{tpu_custom_call.1} parent=35 // pred_fallthru
          _
      $region36: #{tpu_custom_call.1} parent=5 // pred_fallthru
        _
      %p387 = scmp.le.s32.totalorder 1, %s25
      %p388 = scmp.lt.s32.totalorder %s25, 3
      %p389 = pnand %p387, %p388
      %p390 = pneg %p389
      // Predicated region
      $region53: #{tpu_custom_call.1} parent=5 // pred_check
        _
      $region54: #{tpu_custom_call.1} parent=5 // pred_check_branch
        %392 = sbr.rel (%p389) target = $region56
      $region55: #{tpu_custom_call.1} parent=5 // pred_region
        %s393 = ssub.s32 %s25, 1
        %s394 = sand.u32 %s38, 1
        %s395 = scalar_lea.sflag [#allocation3], %s394
        %s396 = sand.u32 %s38, 1
        %s397 = smul.addr %s396, 256
        %s398 = scalar_lea.vmem [#allocation2], %s397
        // Predicated region
        $region57: #{tpu_custom_call.1} parent=55 // pred_check
          %p399 = pneg %p51
        $region58: #{tpu_custom_call.1} parent=55 // pred_check_branch
          %401 = sbr.rel (%p399) target = $region60
        $region59: #{tpu_custom_call.1} parent=55 // pred_region
          %402 = dma.done %s395, 4096
        $region60: #{tpu_custom_call.1} parent=55 // pred_fallthru
          _
        %s403 = sand.u32 %s30, 1
        %s404 = scalar_lea.sflag [#allocation6], %s403
        %s405 = sand.u32 %s64, 1
        %s406 = smul.addr %s405, 256
        %s407 = scalar_lea.vmem [#allocation5], %s406
        // Predicated region
        $region61: #{tpu_custom_call.1} parent=55 // pred_check
          %p408 = pneg %p77
        $region62: #{tpu_custom_call.1} parent=55 // pred_check_branch
          %410 = sbr.rel (%p408) target = $region64
        $region63: #{tpu_custom_call.1} parent=55 // pred_region
          %411 = dma.done %s404, 4096
        $region64: #{tpu_custom_call.1} parent=55 // pred_fallthru
          _
        %s412 = sand.u32 %s30, 1
        %s413 = scalar_lea.sflag [#allocation6], %s412
        %s414 = sand.u32 %s90, 1
        %s415 = smul.addr %s414, 256
        %s416 = scalar_lea.vmem [#allocation7], %s415
        // Predicated region
        $region65: #{tpu_custom_call.1} parent=55 // pred_check
          %p417 = pneg %p103
        $region66: #{tpu_custom_call.1} parent=55 // pred_check_branch
          %419 = sbr.rel (%p417) target = $region68
        $region67: #{tpu_custom_call.1} parent=55 // pred_region
          %420 = dma.done %s413, 4096
        $region68: #{tpu_custom_call.1} parent=55 // pred_fallthru
          _
        // Predicated region
        $region69: #{tpu_custom_call.1} parent=55 // pred_check
          %p421 = pneg %p150
        $region70: #{tpu_custom_call.1} parent=55 // pred_check_branch
          %423 = sbr.rel (%p421) target = $region72
        $region71: #{tpu_custom_call.1} parent=55 // pred_region
          %424 = dma.done [#allocation9], 2048
        $region72: #{tpu_custom_call.1} parent=55 // pred_fallthru
          _
        // Predicated region
        $region73: #{tpu_custom_call.1} parent=55 // pred_check
          %p425 = pneg %p234
        $region74: #{tpu_custom_call.1} parent=55 // pred_check_branch
          %427 = sbr.rel (%p425) target = $region76
        $region75: #{tpu_custom_call.1} parent=55 // pred_region
          %428 = dma.done [#allocation9], 2048
        $region76: #{tpu_custom_call.1} parent=55 // pred_fallthru
          _
        %s429 = sand.u32 %s38, 1
        %s430 = scalar_lea.sflag [#allocation3], %s429
        %s431 = sand.u32 %s38, 1
        %s432 = smul.addr %s431, 256
        %s433 = scalar_lea.vmem [#allocation2], %s432
        %p434 = pneg %p51
        %p435 = pneg %p48
        %s436 = sand.u32 %s30, 1
        %s437 = scalar_lea.sflag [#allocation6], %s436
        %s438 = sand.u32 %s64, 1
        %s439 = smul.addr %s438, 256
        %s440 = scalar_lea.vmem [#allocation5], %s439
        %p441 = pneg %p77
        %p442 = pneg %p74
        %s443 = sand.u32 %s30, 1
        %s444 = scalar_lea.sflag [#allocation6], %s443
        %s445 = sand.u32 %s90, 1
        %s446 = smul.addr %s445, 256
        %s447 = scalar_lea.vmem [#allocation7], %s446
        %p448 = pneg %p103
        %p449 = pneg %p100
        %s450 = smul.u32 8, %s30
        %p451 = scmp.lt.s32.totalorder %s450, 15
        %s452 = scalar_select %p451, %s450, 15
        %s453 = scalar_lea.vmem %s3, %s452
        %p454 = pneg %p129
        %p455 = pneg %p126
        %p456 = pneg %p150
        %p457 = pneg %p147
        %p458 = pneg %p171
        %p459 = pneg %p168
        %p460 = pneg %p192
        %p461 = pneg %p189
        %p462 = pneg %p213
        %p463 = pneg %p210
        %p464 = pneg %p234
        %p465 = pneg %p231
        %p466 = pneg %p260
        %p467 = pneg %p257
        %s468 = sand.u32 %s247, 1
        %s469 = scalar_lea.sflag [#allocation4], %s468
        %s470 = sand.u32 %s247, 1
        %s471 = smul.addr %s470, 256
        %s472 = scalar_lea.vmem [#allocation11], %s471
        %s473 = smul.u32 8, %s30
        %s474 = smul.u32 8, %s30
        %s475 = smul.u32 8, %s30
        %p476 = scmp.lt.s32.totalorder %s475, 15
        %s477 = scalar_select %p476, %s475, 15
        %s478 = scalar_lea.vmem %s3, %s477
        %s479 = smul.u32 8, %s30
        %s480 = smul.u32 8, %s30
        %v481 = vld [vmem:[%s398] sm:$0xff]
        %v482 = vld [vmem:[%s398 + $0x8] sm:$0xff]
        %v483 = vld [vmem:[%s398 + $0x10] sm:$0xff]
        %v484 = vld [vmem:[%s398 + $0x18] sm:$0xff]
        %v485 = vld [vmem:[%s398 + $0x20] sm:$0xff]
        %v486 = vld [vmem:[%s398 + $0x28] sm:$0xff]
        %v487 = vld [vmem:[%s398 + $0x30] sm:$0xff]
        %v488 = vld [vmem:[%s398 + $0x38] sm:$0xff]
        %v489 = vld [vmem:[%s398 + $0x40] sm:$0xff]
        %v490 = vld [vmem:[%s398 + $0x48] sm:$0xff]
        %v491 = vld [vmem:[%s398 + $0x50] sm:$0xff]
        %v492 = vld [vmem:[%s398 + $0x58] sm:$0xff]
        %v493 = vld [vmem:[%s398 + $0x60] sm:$0xff]
        %v494 = vld [vmem:[%s398 + $0x68] sm:$0xff]
        %v495 = vld [vmem:[%s398 + $0x70] sm:$0xff]
        %v496 = vld [vmem:[%s398 + $0x78] sm:$0xff]
        %v497 = vld [vmem:[%s398 + $0x80] sm:$0xff]
        %v498 = vld [vmem:[%s398 + $0x88] sm:$0xff]
        %v499 = vld [vmem:[%s398 + $0x90] sm:$0xff]
        %v500 = vld [vmem:[%s398 + $0x98] sm:$0xff]
        %v501 = vld [vmem:[%s398 + $0xa0] sm:$0xff]
        %v502 = vld [vmem:[%s398 + $0xa8] sm:$0xff]
        %v503 = vld [vmem:[%s398 + $0xb0] sm:$0xff]
        %v504 = vld [vmem:[%s398 + $0xb8] sm:$0xff]
        %v505 = vld [vmem:[%s398 + $0xc0] sm:$0xff]
        %v506 = vld [vmem:[%s398 + $0xc8] sm:$0xff]
        %v507 = vld [vmem:[%s398 + $0xd0] sm:$0xff]
        %v508 = vld [vmem:[%s398 + $0xd8] sm:$0xff]
        %v509 = vld [vmem:[%s398 + $0xe0] sm:$0xff]
        %v510 = vld [vmem:[%s398 + $0xe8] sm:$0xff]
        %v511 = vld [vmem:[%s398 + $0xf0] sm:$0xff]
        %v512 = vld [vmem:[%s398 + $0xf8] sm:$0xff]
        %v513 = vld [vmem:[#allocation8] sm:$0xff]
        %v514 = vld [vmem:[#allocation8 + $0x8] sm:$0xff]
        %v515 = vld [vmem:[#allocation8 + $0x10] sm:$0xff]
        %v516 = vld [vmem:[#allocation8 + $0x18] sm:$0xff]
        %v517 = vld [vmem:[#allocation8 + $0x20] sm:$0xff]
        %v518 = vld [vmem:[#allocation8 + $0x28] sm:$0xff]
        %v519 = vld [vmem:[#allocation8 + $0x30] sm:$0xff]
        %v520 = vld [vmem:[#allocation8 + $0x38] sm:$0xff]
        %v521 = vld [vmem:[#allocation8 + $0x40] sm:$0xff]
        %v522 = vld [vmem:[#allocation8 + $0x48] sm:$0xff]
        %v523 = vld [vmem:[#allocation8 + $0x50] sm:$0xff]
        %v524 = vld [vmem:[#allocation8 + $0x58] sm:$0xff]
        %v525 = vld [vmem:[#allocation8 + $0x60] sm:$0xff]
        %v526 = vld [vmem:[#allocation8 + $0x68] sm:$0xff]
        %v527 = vld [vmem:[#allocation8 + $0x70] sm:$0xff]
        %v528 = vld [vmem:[#allocation8 + $0x78] sm:$0xff]
        %v529 = vld [vmem:[%s5] sm:$0x1]
        %v531 = vlaneseq
        %v532 = vshrl.u32 %v531, 7
        %v533 = vsub.s32 0, %v532
        %v534 = vrot.slane %v529, %v533
        %536 = vmatprep.subr.mxu0 0.0
        %537 = vmatpush1.msra.mxu0 %v513
        %538 = vmatprep.subr.mxu0 0.0
        %539 = vmatpush1.msra.mxu0 %v514
        %540 = vmatprep.subr.mxu0 0.0
        %541 = vmatpush1.msra.mxu0 %v515
        %542 = vmatprep.subr.mxu0 0.0
        %543 = vmatpush1.msra.mxu0 %v516
        %544 = vmatprep.subr.mxu0 0.0
        %545 = vmatpush1.msra.mxu0 %v517
        %546 = vmatprep.subr.mxu0 0.0
        %547 = vmatpush1.msra.mxu0 %v518
        %548 = vmatprep.subr.mxu0 0.0
        %549 = vmatpush1.msra.mxu0 %v519
        %550 = vmatprep.subr.mxu0 0.0
        %551 = vmatpush1.msra.mxu0 %v520
        %552 = vmatprep.subr.mxu0 0.0
        %553 = vmatpush1.msra.mxu0 %v521
        %554 = vmatprep.subr.mxu0 0.0
        %555 = vmatpush1.msra.mxu0 %v522
        %556 = vmatprep.subr.mxu0 0.0
        %557 = vmatpush1.msra.mxu0 %v523
        %558 = vmatprep.subr.mxu0 0.0
        %559 = vmatpush1.msra.mxu0 %v524
        %560 = vmatprep.subr.mxu0 0.0
        %561 = vmatpush1.msra.mxu0 %v525
        %562 = vmatprep.subr.mxu0 0.0
        %563 = vmatpush1.msra.mxu0 %v526
        %564 = vmatprep.subr.mxu0 0.0
        %565 = vmatpush1.msra.mxu0 %v527
        %566 = vmatprep.subr.mxu0 0.0
        %567 = vmatpush1.msra.mxu0 %v528
        %568 = vmatprep.subr.mxu0 0.0
        %569 = vmatpush1.msra.mxu0 0.0
        %570 = vmatprep.subr.mxu0 0.0
        %571 = vmatpush1.msra.mxu0 0.0
        %572 = vmatprep.subr.mxu0 0.0
        %573 = vmatpush1.msra.mxu0 0.0
        %574 = vmatprep.subr.mxu0 0.0
        %575 = vmatpush1.msra.mxu0 0.0
        %576 = vmatprep.subr.mxu0 0.0
        %577 = vmatpush1.msra.mxu0 0.0
        %578 = vmatprep.subr.mxu0 0.0
        %579 = vmatpush1.msra.mxu0 0.0
        %580 = vmatprep.subr.mxu0 0.0
        %581 = vmatpush1.msra.mxu0 0.0
        %582 = vmatprep.subr.mxu0 0.0
        %583 = vmatpush1.msra.mxu0 0.0
        %584 = vmatprep.subr.mxu0 0.0
        %585 = vmatpush1.msra.mxu0 0.0
        %586 = vmatprep.subr.mxu0 0.0
        %587 = vmatpush1.msra.mxu0 0.0
        %588 = vmatprep.subr.mxu0 0.0
        %589 = vmatpush1.msra.mxu0 0.0
        %590 = vmatprep.subr.mxu0 0.0
        %591 = vmatpush1.msra.mxu0 0.0
        %592 = vmatprep.subr.mxu0 0.0
        %593 = vmatpush1.msra.mxu0 0.0
        %594 = vmatprep.subr.mxu0 0.0
        %595 = vmatpush1.msra.mxu0 0.0
        %596 = vmatprep.subr.mxu0 0.0
        %597 = vmatpush1.msra.mxu0 0.0
        %598 = vmatprep.subr.mxu0 0.0
        %599 = vmatpush1.msra.mxu0 0.0
        %600 = vmatprep.mubr.f32.mxu0 0.0
        %601 = vmatmul.mubr.f32.gmra.mrb[0].mxu0 %v481
        %v602 = vpop.f32.mrb[0].mxu0
        %v603 = vadd.f32 %v534, %v602
        %v604 = vpop.f32.mrb[0].mxu0
        %605 = vmatprep.mubr.f32.mxu0 0.0
        %606 = vmatmul.mubr.f32.gmra.mrb[0].mxu0 %v482
        %v607 = vpop.f32.mrb[0].mxu0
        %v608 = vadd.f32 %v534, %v607
        %v609 = vpop.f32.mrb[0].mxu0
        %610 = vmatprep.mubr.f32.mxu0 0.0
        %611 = vmatmul.mubr.f32.gmra.mrb[0].mxu0 %v483
        %v612 = vpop.f32.mrb[0].mxu0
        %v613 = vadd.f32 %v534, %v612
        %v614 = vpop.f32.mrb[0].mxu0
        %615 = vmatprep.mubr.f32.mxu0 0.0
        %616 = vmatmul.mubr.f32.gmra.mrb[0].mxu0 %v484
        %v617 = vpop.f32.mrb[0].mxu0
        %v618 = vadd.f32 %v534, %v617
        %v619 = vpop.f32.mrb[0].mxu0
        %620 = vmatprep.mubr.f32.mxu0 0.0
        %621 = vmatmul.mubr.f32.gmra.mrb[0].mxu0 %v485
        %v622 = vpop.f32.mrb[0].mxu0
        %v623 = vadd.f32 %v534, %v622
        %v624 = vpop.f32.mrb[0].mxu0
        %625 = vmatprep.mubr.f32.mxu0 0.0
        %626 = vmatmul.mubr.f32.gmra.mrb[0].mxu0 %v486
        %v627 = vpop.f32.mrb[0].mxu0
        %v628 = vadd.f32 %v534, %v627
        %v629 = vpop.f32.mrb[0].mxu0
        %630 = vmatprep.mubr.f32.mxu0 0.0
        %631 = vmatmul.mubr.f32.gmra.mrb[0].mxu0 %v487
        %v632 = vpop.f32.mrb[0].mxu0
        %v633 = vadd.f32 %v534, %v632
        %v634 = vpop.f32.mrb[0].mxu0
        %635 = vmatprep.mubr.f32.mxu0 0.0
        %636 = vmatmul.mubr.f32.gmra.mrb[0].mxu0 %v488
        %v637 = vpop.f32.mrb[0].mxu0
        %v638 = vadd.f32 %v534, %v637
        %v639 = vpop.f32.mrb[0].mxu0
        %640 = vmatprep.mubr.f32.mxu0 0.0
        %641 = vmatmul.mubr.f32.gmra.mrb[0].mxu0 %v489
        %v642 = vpop.f32.mrb[0].mxu0
        %v643 = vadd.f32 %v534, %v642
        %v644 = vpop.f32.mrb[0].mxu0
        %645 = vmatprep.mubr.f32.mxu0 0.0
        %646 = vmatmul.mubr.f32.gmra.mrb[0].mxu0 %v490
        %v647 = vpop.f32.mrb[0].mxu0
        %v648 = vadd.f32 %v534, %v647
        %v649 = vpop.f32.mrb[0].mxu0
        %650 = vmatprep.mubr.f32.mxu0 0.0
        %651 = vmatmul.mubr.f32.gmra.mrb[0].mxu0 %v491
        %v652 = vpop.f32.mrb[0].mxu0
        %v653 = vadd.f32 %v534, %v652
        %v654 = vpop.f32.mrb[0].mxu0
        %655 = vmatprep.mubr.f32.mxu0 0.0
        %656 = vmatmul.mubr.f32.gmra.mrb[0].mxu0 %v492
        %v657 = vpop.f32.mrb[0].mxu0
        %v658 = vadd.f32 %v534, %v657
        %v659 = vpop.f32.mrb[0].mxu0
        %660 = vmatprep.mubr.f32.mxu0 0.0
        %661 = vmatmul.mubr.f32.gmra.mrb[0].mxu0 %v493
        %v662 = vpop.f32.mrb[0].mxu0
        %v663 = vadd.f32 %v534, %v662
        %v664 = vpop.f32.mrb[0].mxu0
        %665 = vmatprep.mubr.f32.mxu0 0.0
        %666 = vmatmul.mubr.f32.gmra.mrb[0].mxu0 %v494
        %v667 = vpop.f32.mrb[0].mxu0
        %v668 = vadd.f32 %v534, %v667
        %v669 = vpop.f32.mrb[0].mxu0
        %670 = vmatprep.mubr.f32.mxu0 0.0
        %671 = vmatmul.mubr.f32.gmra.mrb[0].mxu0 %v495
        %v672 = vpop.f32.mrb[0].mxu0
        %v673 = vadd.f32 %v534, %v672
        %v674 = vpop.f32.mrb[0].mxu0
        %675 = vmatprep.mubr.f32.mxu0 0.0
        %676 = vmatmul.mubr.f32.gmra.mrb[0].mxu0 %v496
        %v677 = vpop.f32.mrb[0].mxu0
        %v678 = vadd.f32 %v534, %v677
        %v679 = vpop.f32.mrb[0].mxu0
        %680 = vmatprep.mubr.f32.mxu0 0.0
        %681 = vmatmul.mubr.f32.gmra.mrb[0].mxu0 %v497
        %v682 = vpop.f32.mrb[0].mxu0
        %v683 = vadd.f32 %v534, %v682
        %v684 = vpop.f32.mrb[0].mxu0
        %685 = vmatprep.mubr.f32.mxu0 0.0
        %686 = vmatmul.mubr.f32.gmra.mrb[0].mxu0 %v498
        %v687 = vpop.f32.mrb[0].mxu0
        %v688 = vadd.f32 %v534, %v687
        %v689 = vpop.f32.mrb[0].mxu0
        %690 = vmatprep.mubr.f32.mxu0 0.0
        %691 = vmatmul.mubr.f32.gmra.mrb[0].mxu0 %v499
        %v692 = vpop.f32.mrb[0].mxu0
        %v693 = vadd.f32 %v534, %v692
        %v694 = vpop.f32.mrb[0].mxu0
        %695 = vmatprep.mubr.f32.mxu0 0.0
        %696 = vmatmul.mubr.f32.gmra.mrb[0].mxu0 %v500
        %v697 = vpop.f32.mrb[0].mxu0
        %v698 = vadd.f32 %v534, %v697
        %v699 = vpop.f32.mrb[0].mxu0
        %700 = vmatprep.mubr.f32.mxu0 0.0
        %701 = vmatmul.mubr.f32.gmra.mrb[0].mxu0 %v501
        %v702 = vpop.f32.mrb[0].mxu0
        %v703 = vadd.f32 %v534, %v702
        %v704 = vpop.f32.mrb[0].mxu0
        %705 = vmatprep.mubr.f32.mxu0 0.0
        %706 = vmatmul.mubr.f32.gmra.mrb[0].mxu0 %v502
        %v707 = vpop.f32.mrb[0].mxu0
        %v708 = vadd.f32 %v534, %v707
        %v709 = vpop.f32.mrb[0].mxu0
        %710 = vmatprep.mubr.f32.mxu0 0.0
        %711 = vmatmul.mubr.f32.gmra.mrb[0].mxu0 %v503
        %v712 = vpop.f32.mrb[0].mxu0
        %v713 = vadd.f32 %v534, %v712
        %v714 = vpop.f32.mrb[0].mxu0
        %715 = vmatprep.mubr.f32.mxu0 0.0
        %716 = vmatmul.mubr.f32.gmra.mrb[0].mxu0 %v504
        %v717 = vpop.f32.mrb[0].mxu0
        %v718 = vadd.f32 %v534, %v717
        %v719 = vpop.f32.mrb[0].mxu0
        %720 = vmatprep.mubr.f32.mxu0 0.0
        %721 = vmatmul.mubr.f32.gmra.mrb[0].mxu0 %v505
        %v722 = vpop.f32.mrb[0].mxu0
        %v723 = vadd.f32 %v534, %v722
        %v724 = vpop.f32.mrb[0].mxu0
        %725 = vmatprep.mubr.f32.mxu0 0.0
        %726 = vmatmul.mubr.f32.gmra.mrb[0].mxu0 %v506
        %v727 = vpop.f32.mrb[0].mxu0
        %v728 = vadd.f32 %v534, %v727
        %v729 = vpop.f32.mrb[0].mxu0
        %730 = vmatprep.mubr.f32.mxu0 0.0
        %731 = vmatmul.mubr.f32.gmra.mrb[0].mxu0 %v507
        %v732 = vpop.f32.mrb[0].mxu0
        %v733 = vadd.f32 %v534, %v732
        %v734 = vpop.f32.mrb[0].mxu0
        %735 = vmatprep.mubr.f32.mxu0 0.0
        %736 = vmatmul.mubr.f32.gmra.mrb[0].mxu0 %v508
        %v737 = vpop.f32.mrb[0].mxu0
        %v738 = vadd.f32 %v534, %v737
        %v739 = vpop.f32.mrb[0].mxu0
        %740 = vmatprep.mubr.f32.mxu0 0.0
        %741 = vmatmul.mubr.f32.gmra.mrb[0].mxu0 %v509
        %v742 = vpop.f32.mrb[0].mxu0
        %v743 = vadd.f32 %v534, %v742
        %v744 = vpop.f32.mrb[0].mxu0
        %745 = vmatprep.mubr.f32.mxu0 0.0
        %746 = vmatmul.mubr.f32.gmra.mrb[0].mxu0 %v510
        %v747 = vpop.f32.mrb[0].mxu0
        %v748 = vadd.f32 %v534, %v747
        %v749 = vpop.f32.mrb[0].mxu0
        %750 = vmatprep.mubr.f32.mxu0 0.0
        %751 = vmatmul.mubr.f32.gmra.mrb[0].mxu0 %v511
        %v752 = vpop.f32.mrb[0].mxu0
        %v753 = vadd.f32 %v534, %v752
        %v754 = vpop.f32.mrb[0].mxu0
        %755 = vmatprep.mubr.f32.mxu0 0.0
        %756 = vmatmul.mubr.f32.gmra.mrb[0].mxu0 %v512
        %v757 = vpop.f32.mrb[0].mxu0
        %v758 = vadd.f32 %v534, %v757
        %v759 = vpop.f32.mrb[0].mxu0
        %760 = vdwg.mxu0
        %v761 = vld [vmem:[%s6] sm:$0xff]
        %v762 = vld [vmem:[%s6 + $0x8] sm:$0xff]
        %v763 = vld [vmem:[%s6 + $0x10] sm:$0xff]
        %v764 = vld [vmem:[%s6 + $0x18] sm:$0xff]
        %v765 = vld [vmem:[%s407] sm:$0xff]
        %v766 = vld [vmem:[%s407 + $0x8] sm:$0xff]
        %v767 = vld [vmem:[%s407 + $0x10] sm:$0xff]
        %v768 = vld [vmem:[%s407 + $0x18] sm:$0xff]
        %v769 = vld [vmem:[%s407 + $0x20] sm:$0xff]
        %v770 = vld [vmem:[%s407 + $0x28] sm:$0xff]
        %v771 = vld [vmem:[%s407 + $0x30] sm:$0xff]
        %v772 = vld [vmem:[%s407 + $0x38] sm:$0xff]
        %v773 = vld [vmem:[%s407 + $0x40] sm:$0xff]
        %v774 = vld [vmem:[%s407 + $0x48] sm:$0xff]
        %v775 = vld [vmem:[%s407 + $0x50] sm:$0xff]
        %v776 = vld [vmem:[%s407 + $0x58] sm:$0xff]
        %v777 = vld [vmem:[%s407 + $0x60] sm:$0xff]
        %v778 = vld [vmem:[%s407 + $0x68] sm:$0xff]
        %v779 = vld [vmem:[%s407 + $0x70] sm:$0xff]
        %v780 = vld [vmem:[%s407 + $0x78] sm:$0xff]
        %v781 = vld [vmem:[%s407 + $0x80] sm:$0xff]
        %v782 = vld [vmem:[%s407 + $0x88] sm:$0xff]
        %v783 = vld [vmem:[%s407 + $0x90] sm:$0xff]
        %v784 = vld [vmem:[%s407 + $0x98] sm:$0xff]
        %v785 = vld [vmem:[%s407 + $0xa0] sm:$0xff]
        %v786 = vld [vmem:[%s407 + $0xa8] sm:$0xff]
        %v787 = vld [vmem:[%s407 + $0xb0] sm:$0xff]
        %v788 = vld [vmem:[%s407 + $0xb8] sm:$0xff]
        %v789 = vld [vmem:[%s407 + $0xc0] sm:$0xff]
        %v790 = vld [vmem:[%s407 + $0xc8] sm:$0xff]
        %v791 = vld [vmem:[%s407 + $0xd0] sm:$0xff]
        %v792 = vld [vmem:[%s407 + $0xd8] sm:$0xff]
        %v793 = vld [vmem:[%s407 + $0xe0] sm:$0xff]
        %v794 = vld [vmem:[%s407 + $0xe8] sm:$0xff]
        %v795 = vld [vmem:[%s407 + $0xf0] sm:$0xff]
        %v796 = vld [vmem:[%s407 + $0xf8] sm:$0xff]
        %v797 = vld [vmem:[%s7] sm:$0xff]
        %v798 = vld [vmem:[%s7 + $0x8] sm:$0xff]
        %v799 = vld [vmem:[%s7 + $0x10] sm:$0xff]
        %v800 = vld [vmem:[%s7 + $0x18] sm:$0xff]
        %802 = vset.pattern.permute.xlu0 0
        %803 = vperm.xlu0 %802, %v797
        %v804 = vpop.permute.xlu0 %803
        %807 = vset.pattern.permute.xlu0 0
        %808 = vperm.xlu0 %807, %v798
        %v809 = vpop.permute.xlu0 %808
        %812 = vset.pattern.permute.xlu0 0
        %813 = vperm.xlu0 %812, %v799
        %v814 = vpop.permute.xlu0 %813
        %817 = vset.pattern.permute.xlu0 0
        %818 = vperm.xlu0 %817, %v800
        %v819 = vpop.permute.xlu0 %818
        %vm821 = vcmask 261120
        %v823 = vsel %vm821, %v761, 0
        %v826 = vsel %vm821, %v762, 0
        %v829 = vsel %vm821, %v763, 0
        %v832 = vsel %vm821, %v764, 0
        %834 = vmatprep.subr.mxu0 %v766
        %835 = vmatpush1.msra.mxu0 %v765
        %836 = vmatprep.subr.mxu0 %v774
        %837 = vmatpush1.msra.mxu0 %v773
        %838 = vmatprep.subr.mxu0 %v782
        %839 = vmatpush1.msra.mxu0 %v781
        %840 = vmatprep.subr.mxu0 %v790
        %841 = vmatpush1.msra.mxu0 %v789
        %842 = vmatprep.subr.mxu0 0.0
        %843 = vmatpush1.msra.mxu0 0.0
        %844 = vmatprep.subr.mxu0 0.0
        %845 = vmatpush1.msra.mxu0 0.0
        %846 = vmatprep.subr.mxu0 0.0
        %847 = vmatpush1.msra.mxu0 0.0
        %848 = vmatprep.subr.mxu0 0.0
        %849 = vmatpush1.msra.mxu0 0.0
        %850 = vmatprep.subr.mxu0 0.0
        %851 = vmatpush1.msra.mxu0 0.0
        %852 = vmatprep.subr.mxu0 0.0
        %853 = vmatpush1.msra.mxu0 0.0
        %854 = vmatprep.subr.mxu0 0.0
        %855 = vmatpush1.msra.mxu0 0.0
        %856 = vmatprep.subr.mxu0 0.0
        %857 = vmatpush1.msra.mxu0 0.0
        %858 = vmatprep.subr.mxu0 0.0
        %859 = vmatpush1.msra.mxu0 0.0
        %860 = vmatprep.subr.mxu0 0.0
        %861 = vmatpush1.msra.mxu0 0.0
        %862 = vmatprep.subr.mxu0 0.0
        %863 = vmatpush1.msra.mxu0 0.0
        %864 = vmatprep.subr.mxu0 0.0
        %865 = vmatpush1.msra.mxu0 0.0
        %866 = vmatprep.subr.mxu0 0.0
        %867 = vmatpush1.msra.mxu0 0.0
        %868 = vmatprep.subr.mxu0 0.0
        %869 = vmatpush1.msra.mxu0 0.0
        %870 = vmatprep.subr.mxu0 0.0
        %871 = vmatpush1.msra.mxu0 0.0
        %872 = vmatprep.subr.mxu0 0.0
        %873 = vmatpush1.msra.mxu0 0.0
        %874 = vmatprep.subr.mxu0 0.0
        %875 = vmatpush1.msra.mxu0 0.0
        %876 = vmatprep.subr.mxu0 0.0
        %877 = vmatpush1.msra.mxu0 0.0
        %878 = vmatprep.subr.mxu0 0.0
        %879 = vmatpush1.msra.mxu0 0.0
        %880 = vmatprep.subr.mxu0 0.0
        %881 = vmatpush1.msra.mxu0 0.0
        %882 = vmatprep.subr.mxu0 0.0
        %883 = vmatpush1.msra.mxu0 0.0
        %884 = vmatprep.subr.mxu0 0.0
        %885 = vmatpush1.msra.mxu0 0.0
        %886 = vmatprep.subr.mxu0 0.0
        %887 = vmatpush1.msra.mxu0 0.0
        %888 = vmatprep.subr.mxu0 0.0
        %889 = vmatpush1.msra.mxu0 0.0
        %890 = vmatprep.subr.mxu0 0.0
        %891 = vmatpush1.msra.mxu0 0.0
        %892 = vmatprep.subr.mxu0 0.0
        %893 = vmatpush1.msra.mxu0 0.0
        %894 = vmatprep.subr.mxu0 0.0
        %895 = vmatpush1.msra.mxu0 0.0
        %896 = vmatprep.subr.mxu0 0.0
        %897 = vmatpush1.msra.mxu0 0.0
        %898 = vmatprep.mubr.f32.mxu0 0.0
        %899 = vmatmul.mubr.f32.gmra.mrb[0].mxu0 %v823
        %v900 = vpop.f32.mrb[0].mxu0
        %v901 = vadd.f32 %v804, %v900
        %v902 = vpop.f32.mrb[0].mxu0
        %v903 = vadd.f32 %v804, %v902
        %904 = vmatprep.mubr.f32.mxu0 0.0
        %905 = vmatmul.mubr.f32.gmra.mrb[0].mxu0 %v826
        %v906 = vpop.f32.mrb[0].mxu0
        %v907 = vadd.f32 %v809, %v906
        %v908 = vpop.f32.mrb[0].mxu0
        %v909 = vadd.f32 %v809, %v908
        %910 = vmatprep.mubr.f32.mxu0 0.0
        %911 = vmatmul.mubr.f32.gmra.mrb[0].mxu0 %v829
        %v912 = vpop.f32.mrb[0].mxu0
        %v913 = vadd.f32 %v814, %v912
        %v914 = vpop.f32.mrb[0].mxu0
        %v915 = vadd.f32 %v814, %v914
        %916 = vmatprep.mubr.f32.mxu0 0.0
        %917 = vmatmul.mubr.f32.gmra.mrb[0].mxu0 %v832
        %v918 = vpop.f32.mrb[0].mxu0
        %v919 = vadd.f32 %v819, %v918
        %v920 = vpop.f32.mrb[0].mxu0
        %v921 = vadd.f32 %v819, %v920
        %922 = vdwg.mxu0
        %923 = vmatprep.subr.mxu0 %v768
        %924 = vmatpush1.msra.mxu0 %v767
        %925 = vmatprep.subr.mxu0 %v776
        %926 = vmatpush1.msra.mxu0 %v775
        %927 = vmatprep.subr.mxu0 %v784
        %928 = vmatpush1.msra.mxu0 %v783
        %929 = vmatprep.subr.mxu0 %v792
        %930 = vmatpush1.msra.mxu0 %v791
        %931 = vmatprep.subr.mxu0 0.0
        %932 = vmatpush1.msra.mxu0 0.0
        %933 = vmatprep.subr.mxu0 0.0
        %934 = vmatpush1.msra.mxu0 0.0
        %935 = vmatprep.subr.mxu0 0.0
        %936 = vmatpush1.msra.mxu0 0.0
        %937 = vmatprep.subr.mxu0 0.0
        %938 = vmatpush1.msra.mxu0 0.0
        %939 = vmatprep.subr.mxu0 0.0
        %940 = vmatpush1.msra.mxu0 0.0
        %941 = vmatprep.subr.mxu0 0.0
        %942 = vmatpush1.msra.mxu0 0.0
        %943 = vmatprep.subr.mxu0 0.0
        %944 = vmatpush1.msra.mxu0 0.0
        %945 = vmatprep.subr.mxu0 0.0
        %946 = vmatpush1.msra.mxu0 0.0
        %947 = vmatprep.subr.mxu0 0.0
        %948 = vmatpush1.msra.mxu0 0.0
        %949 = vmatprep.subr.mxu0 0.0
        %950 = vmatpush1.msra.mxu0 0.0
        %951 = vmatprep.subr.mxu0 0.0
        %952 = vmatpush1.msra.mxu0 0.0
        %953 = vmatprep.subr.mxu0 0.0
        %954 = vmatpush1.msra.mxu0 0.0
        %955 = vmatprep.subr.mxu0 0.0
        %956 = vmatpush1.msra.mxu0 0.0
        %957 = vmatprep.subr.mxu0 0.0
        %958 = vmatpush1.msra.mxu0 0.0
        %959 = vmatprep.subr.mxu0 0.0
        %960 = vmatpush1.msra.mxu0 0.0
        %961 = vmatprep.subr.mxu0 0.0
        %962 = vmatpush1.msra.mxu0 0.0
        %963 = vmatprep.subr.mxu0 0.0
        %964 = vmatpush1.msra.mxu0 0.0
        %965 = vmatprep.subr.mxu0 0.0
        %966 = vmatpush1.msra.mxu0 0.0
        %967 = vmatprep.subr.mxu0 0.0
        %968 = vmatpush1.msra.mxu0 0.0
        %969 = vmatprep.subr.mxu0 0.0
        %970 = vmatpush1.msra.mxu0 0.0
        %971 = vmatprep.subr.mxu0 0.0
        %972 = vmatpush1.msra.mxu0 0.0
        %973 = vmatprep.subr.mxu0 0.0
        %974 = vmatpush1.msra.mxu0 0.0
        %975 = vmatprep.subr.mxu0 0.0
        %976 = vmatpush1.msra.mxu0 0.0
        %977 = vmatprep.subr.mxu0 0.0
        %978 = vmatpush1.msra.mxu0 0.0
        %979 = vmatprep.subr.mxu0 0.0
        %980 = vmatpush1.msra.mxu0 0.0
        %981 = vmatprep.subr.mxu0 0.0
        %982 = vmatpush1.msra.mxu0 0.0
        %983 = vmatprep.subr.mxu0 0.0
        %984 = vmatpush1.msra.mxu0 0.0
        %985 = vmatprep.subr.mxu0 0.0
        %986 = vmatpush1.msra.mxu0 0.0
        %987 = vmatprep.mubr.f32.mxu0 0.0
        %988 = vmatmul.mubr.f32.gmra.mrb[0].mxu0 %v823
        %v989 = vpop.f32.mrb[0].mxu0
        %v990 = vadd.f32 %v804, %v989
        %v991 = vpop.f32.mrb[0].mxu0
        %v992 = vadd.f32 %v804, %v991
        %993 = vmatprep.mubr.f32.mxu0 0.0
        %994 = vmatmul.mubr.f32.gmra.mrb[0].mxu0 %v826
        %v995 = vpop.f32.mrb[0].mxu0
        %v996 = vadd.f32 %v809, %v995
        %v997 = vpop.f32.mrb[0].mxu0
        %v998 = vadd.f32 %v809, %v997
        %999 = vmatprep.mubr.f32.mxu0 0.0
        %1000 = vmatmul.mubr.f32.gmra.mrb[0].mxu0 %v829
        %v1001 = vpop.f32.mrb[0].mxu0
        %v1002 = vadd.f32 %v814, %v1001
        %v1003 = vpop.f32.mrb[0].mxu0
        %v1004 = vadd.f32 %v814, %v1003
        %1005 = vmatprep.mubr.f32.mxu0 0.0
        %1006 = vmatmul.mubr.f32.gmra.mrb[0].mxu0 %v832
        %v1007 = vpop.f32.mrb[0].mxu0
        %v1008 = vadd.f32 %v819, %v1007
        %v1009 = vpop.f32.mrb[0].mxu0
        %v1010 = vadd.f32 %v819, %v1009
        %1011 = vdwg.mxu0
        %1012 = vmatprep.subr.mxu0 %v770
        %1013 = vmatpush1.msra.mxu0 %v769
        %1014 = vmatprep.subr.mxu0 %v778
        %1015 = vmatpush1.msra.mxu0 %v777
        %1016 = vmatprep.subr.mxu0 %v786
        %1017 = vmatpush1.msra.mxu0 %v785
        %1018 = vmatprep.subr.mxu0 %v794
        %1019 = vmatpush1.msra.mxu0 %v793
        %1020 = vmatprep.subr.mxu0 0.0
        %1021 = vmatpush1.msra.mxu0 0.0
        %1022 = vmatprep.subr.mxu0 0.0
        %1023 = vmatpush1.msra.mxu0 0.0
        %1024 = vmatprep.subr.mxu0 0.0
        %1025 = vmatpush1.msra.mxu0 0.0
        %1026 = vmatprep.subr.mxu0 0.0
        %1027 = vmatpush1.msra.mxu0 0.0
        %1028 = vmatprep.subr.mxu0 0.0
        %1029 = vmatpush1.msra.mxu0 0.0
        %1030 = vmatprep.subr.mxu0 0.0
        %1031 = vmatpush1.msra.mxu0 0.0
        %1032 = vmatprep.subr.mxu0 0.0
        %1033 = vmatpush1.msra.mxu0 0.0
        %1034 = vmatprep.subr.mxu0 0.0
        %1035 = vmatpush1.msra.mxu0 0.0
        %1036 = vmatprep.subr.mxu0 0.0
        %1037 = vmatpush1.msra.mxu0 0.0
        %1038 = vmatprep.subr.mxu0 0.0
        %1039 = vmatpush1.msra.mxu0 0.0
        %1040 = vmatprep.subr.mxu0 0.0
        %1041 = vmatpush1.msra.mxu0 0.0
        %1042 = vmatprep.subr.mxu0 0.0
        %1043 = vmatpush1.msra.mxu0 0.0
        %1044 = vmatprep.subr.mxu0 0.0
        %1045 = vmatpush1.msra.mxu0 0.0
        %1046 = vmatprep.subr.mxu0 0.0
        %1047 = vmatpush1.msra.mxu0 0.0
        %1048 = vmatprep.subr.mxu0 0.0
        %1049 = vmatpush1.msra.mxu0 0.0
        %1050 = vmatprep.subr.mxu0 0.0
        %1051 = vmatpush1.msra.mxu0 0.0
        %1052 = vmatprep.subr.mxu0 0.0
        %1053 = vmatpush1.msra.mxu0 0.0
        %1054 = vmatprep.subr.mxu0 0.0
        %1055 = vmatpush1.msra.mxu0 0.0
        %1056 = vmatprep.subr.mxu0 0.0
        %1057 = vmatpush1.msra.mxu0 0.0
        %1058 = vmatprep.subr.mxu0 0.0
        %1059 = vmatpush1.msra.mxu0 0.0
        %1060 = vmatprep.subr.mxu0 0.0
        %1061 = vmatpush1.msra.mxu0 0.0
        %1062 = vmatprep.subr.mxu0 0.0
        %1063 = vmatpush1.msra.mxu0 0.0
        %1064 = vmatprep.subr.mxu0 0.0
        %1065 = vmatpush1.msra.mxu0 0.0
        %1066 = vmatprep.subr.mxu0 0.0
        %1067 = vmatpush1.msra.mxu0 0.0
        %1068 = vmatprep.subr.mxu0 0.0
        %1069 = vmatpush1.msra.mxu0 0.0
        %1070 = vmatprep.subr.mxu0 0.0
        %1071 = vmatpush1.msra.mxu0 0.0
        %1072 = vmatprep.subr.mxu0 0.0
        %1073 = vmatpush1.msra.mxu0 0.0
        %1074 = vmatprep.subr.mxu0 0.0
        %1075 = vmatpush1.msra.mxu0 0.0
        %1076 = vmatprep.mubr.f32.mxu0 0.0
        %1077 = vmatmul.mubr.f32.gmra.mrb[0].mxu0 %v823
        %v1078 = vpop.f32.mrb[0].mxu0
        %v1079 = vadd.f32 %v804, %v1078
        %v1080 = vpop.f32.mrb[0].mxu0
        %v1081 = vadd.f32 %v804, %v1080
        %1082 = vmatprep.mubr.f32.mxu0 0.0
        %1083 = vmatmul.mubr.f32.gmra.mrb[0].mxu0 %v826
        %v1084 = vpop.f32.mrb[0].mxu0
        %v1085 = vadd.f32 %v809, %v1084
        %v1086 = vpop.f32.mrb[0].mxu0
        %v1087 = vadd.f32 %v809, %v1086
        %1088 = vmatprep.mubr.f32.mxu0 0.0
        %1089 = vmatmul.mubr.f32.gmra.mrb[0].mxu0 %v829
        %v1090 = vpop.f32.mrb[0].mxu0
        %v1091 = vadd.f32 %v814, %v1090
        %v1092 = vpop.f32.mrb[0].mxu0
        %v1093 = vadd.f32 %v814, %v1092
        %1094 = vmatprep.mubr.f32.mxu0 0.0
        %1095 = vmatmul.mubr.f32.gmra.mrb[0].mxu0 %v832
        %v1096 = vpop.f32.mrb[0].mxu0
        %v1097 = vadd.f32 %v819, %v1096
        %v1098 = vpop.f32.mrb[0].mxu0
        %v1099 = vadd.f32 %v819, %v1098
        %1100 = vdwg.mxu0
        %1101 = vmatprep.subr.mxu0 %v772
        %1102 = vmatpush1.msra.mxu0 %v771
        %1103 = vmatprep.subr.mxu0 %v780
        %1104 = vmatpush1.msra.mxu0 %v779
        %1105 = vmatprep.subr.mxu0 %v788
        %1106 = vmatpush1.msra.mxu0 %v787
        %1107 = vmatprep.subr.mxu0 %v796
        %1108 = vmatpush1.msra.mxu0 %v795
        %1109 = vmatprep.subr.mxu0 0.0
        %1110 = vmatpush1.msra.mxu0 0.0
        %1111 = vmatprep.subr.mxu0 0.0
        %1112 = vmatpush1.msra.mxu0 0.0
        %1113 = vmatprep.subr.mxu0 0.0
        %1114 = vmatpush1.msra.mxu0 0.0
        %1115 = vmatprep.subr.mxu0 0.0
        %1116 = vmatpush1.msra.mxu0 0.0
        %1117 = vmatprep.subr.mxu0 0.0
        %1118 = vmatpush1.msra.mxu0 0.0
        %1119 = vmatprep.subr.mxu0 0.0
        %1120 = vmatpush1.msra.mxu0 0.0
        %1121 = vmatprep.subr.mxu0 0.0
        %1122 = vmatpush1.msra.mxu0 0.0
        %1123 = vmatprep.subr.mxu0 0.0
        %1124 = vmatpush1.msra.mxu0 0.0
        %1125 = vmatprep.subr.mxu0 0.0
        %1126 = vmatpush1.msra.mxu0 0.0
        %1127 = vmatprep.subr.mxu0 0.0
        %1128 = vmatpush1.msra.mxu0 0.0
        %1129 = vmatprep.subr.mxu0 0.0
        %1130 = vmatpush1.msra.mxu0 0.0
        %1131 = vmatprep.subr.mxu0 0.0
        %1132 = vmatpush1.msra.mxu0 0.0
        %1133 = vmatprep.subr.mxu0 0.0
        %1134 = vmatpush1.msra.mxu0 0.0
        %1135 = vmatprep.subr.mxu0 0.0
        %1136 = vmatpush1.msra.mxu0 0.0
        %1137 = vmatprep.subr.mxu0 0.0
        %1138 = vmatpush1.msra.mxu0 0.0
        %1139 = vmatprep.subr.mxu0 0.0
        %1140 = vmatpush1.msra.mxu0 0.0
        %1141 = vmatprep.subr.mxu0 0.0
        %1142 = vmatpush1.msra.mxu0 0.0
        %1143 = vmatprep.subr.mxu0 0.0
        %1144 = vmatpush1.msra.mxu0 0.0
        %1145 = vmatprep.subr.mxu0 0.0
        %1146 = vmatpush1.msra.mxu0 0.0
        %1147 = vmatprep.subr.mxu0 0.0
        %1148 = vmatpush1.msra.mxu0 0.0
        %1149 = vmatprep.subr.mxu0 0.0
        %1150 = vmatpush1.msra.mxu0 0.0
        %1151 = vmatprep.subr.mxu0 0.0
        %1152 = vmatpush1.msra.mxu0 0.0
        %1153 = vmatprep.subr.mxu0 0.0
        %1154 = vmatpush1.msra.mxu0 0.0
        %1155 = vmatprep.subr.mxu0 0.0
        %1156 = vmatpush1.msra.mxu0 0.0
        %1157 = vmatprep.subr.mxu0 0.0
        %1158 = vmatpush1.msra.mxu0 0.0
        %1159 = vmatprep.subr.mxu0 0.0
        %1160 = vmatpush1.msra.mxu0 0.0
        %1161 = vmatprep.subr.mxu0 0.0
        %1162 = vmatpush1.msra.mxu0 0.0
        %1163 = vmatprep.subr.mxu0 0.0
        %1164 = vmatpush1.msra.mxu0 0.0
        %1165 = vmatprep.mubr.f32.mxu0 0.0
        %1166 = vmatmul.mubr.f32.gmra.mrb[0].mxu0 %v823
        %v1167 = vpop.f32.mrb[0].mxu0
        %v1168 = vadd.f32 %v804, %v1167
        %v1169 = vpop.f32.mrb[0].mxu0
        %v1170 = vadd.f32 %v804, %v1169
        %1171 = vmatprep.mubr.f32.mxu0 0.0
        %1172 = vmatmul.mubr.f32.gmra.mrb[0].mxu0 %v826
        %v1173 = vpop.f32.mrb[0].mxu0
        %v1174 = vadd.f32 %v809, %v1173
        %v1175 = vpop.f32.mrb[0].mxu0
        %v1176 = vadd.f32 %v809, %v1175
        %1177 = vmatprep.mubr.f32.mxu0 0.0
        %1178 = vmatmul.mubr.f32.gmra.mrb[0].mxu0 %v829
        %v1179 = vpop.f32.mrb[0].mxu0
        %v1180 = vadd.f32 %v814, %v1179
        %v1181 = vpop.f32.mrb[0].mxu0
        %v1182 = vadd.f32 %v814, %v1181
        %1183 = vmatprep.mubr.f32.mxu0 0.0
        %1184 = vmatmul.mubr.f32.gmra.mrb[0].mxu0 %v832
        %v1185 = vpop.f32.mrb[0].mxu0
        %v1186 = vadd.f32 %v819, %v1185
        %v1187 = vpop.f32.mrb[0].mxu0
        %v1188 = vadd.f32 %v819, %v1187
        %1189 = vdwg.mxu0
        %v1190 = vld [vmem:[#allocation10] sm:$0xff]
        %v1191 = vld [vmem:[#allocation10 + $0x8] sm:$0xff]
        %v1192 = vld [vmem:[#allocation10 + $0x10] sm:$0xff]
        %v1193 = vld [vmem:[#allocation10 + $0x18] sm:$0xff]
        %v1194 = vld [vmem:[#allocation10 + $0x20] sm:$0xff]
        %v1195 = vld [vmem:[#allocation10 + $0x28] sm:$0xff]
        %v1196 = vld [vmem:[#allocation10 + $0x30] sm:$0xff]
        %v1197 = vld [vmem:[#allocation10 + $0x38] sm:$0xff]
        %v1198 = vld [vmem:[#allocation10 + $0x40] sm:$0xff]
        %v1199 = vld [vmem:[#allocation10 + $0x48] sm:$0xff]
        %v1200 = vld [vmem:[#allocation10 + $0x50] sm:$0xff]
        %v1201 = vld [vmem:[#allocation10 + $0x58] sm:$0xff]
        %v1202 = vld [vmem:[#allocation10 + $0x60] sm:$0xff]
        %v1203 = vld [vmem:[#allocation10 + $0x68] sm:$0xff]
        %v1204 = vld [vmem:[#allocation10 + $0x70] sm:$0xff]
        %v1205 = vld [vmem:[#allocation10 + $0x78] sm:$0xff]
        %v1206 = vmul.f32 %v1190, %v901
        %v1207 = vmul.f32 %v1191, %v907
        %v1208 = vmul.f32 %v1192, %v913
        %v1209 = vmul.f32 %v1193, %v919
        %v1210 = vmul.f32 %v1194, %v901
        %v1211 = vmul.f32 %v1195, %v907
        %v1212 = vmul.f32 %v1196, %v913
        %v1213 = vmul.f32 %v1197, %v919
        %v1214 = vmul.f32 %v1198, %v901
        %v1215 = vmul.f32 %v1199, %v907
        %v1216 = vmul.f32 %v1200, %v913
        %v1217 = vmul.f32 %v1201, %v919
        %v1218 = vmul.f32 %v1202, %v901
        %v1219 = vmul.f32 %v1203, %v907
        %v1220 = vmul.f32 %v1204, %v913
        %v1221 = vmul.f32 %v1205, %v919
        %v1222 = vld [vmem:[%s416] sm:$0xff]
        %v1223 = vld [vmem:[%s416 + $0x8] sm:$0xff]
        %v1224 = vld [vmem:[%s416 + $0x10] sm:$0xff]
        %v1225 = vld [vmem:[%s416 + $0x18] sm:$0xff]
        %1226 = vmatprep.subr.mxu0 0.0
        %1227 = vmatpush1.msra.mxu0 %v1206
        %1228 = vmatprep.subr.mxu0 0.0
        %1229 = vmatpush1.msra.mxu0 %v1207
        %1230 = vmatprep.subr.mxu0 0.0
        %1231 = vmatpush1.msra.mxu0 %v1208
        %1232 = vmatprep.subr.mxu0 0.0
        %1233 = vmatpush1.msra.mxu0 %v1209
        %1234 = vmatprep.subr.mxu0 0.0
        %1235 = vmatpush1.msra.mxu0 %v1210
        %1236 = vmatprep.subr.mxu0 0.0
        %1237 = vmatpush1.msra.mxu0 %v1211
        %1238 = vmatprep.subr.mxu0 0.0
        %1239 = vmatpush1.msra.mxu0 %v1212
        %1240 = vmatprep.subr.mxu0 0.0
        %1241 = vmatpush1.msra.mxu0 %v1213
        %1242 = vmatprep.subr.mxu0 0.0
        %1243 = vmatpush1.msra.mxu0 %v1214
        %1244 = vmatprep.subr.mxu0 0.0
        %1245 = vmatpush1.msra.mxu0 %v1215
        %1246 = vmatprep.subr.mxu0 0.0
        %1247 = vmatpush1.msra.mxu0 %v1216
        %1248 = vmatprep.subr.mxu0 0.0
        %1249 = vmatpush1.msra.mxu0 %v1217
        %1250 = vmatprep.subr.mxu0 0.0
        %1251 = vmatpush1.msra.mxu0 %v1218
        %1252 = vmatprep.subr.mxu0 0.0
        %1253 = vmatpush1.msra.mxu0 %v1219
        %1254 = vmatprep.subr.mxu0 0.0
        %1255 = vmatpush1.msra.mxu0 %v1220
        %1256 = vmatprep.subr.mxu0 0.0
        %1257 = vmatpush1.msra.mxu0 %v1221
        %1258 = vmatprep.subr.mxu0 0.0
        %1259 = vmatpush1.msra.mxu0 0.0
        %1260 = vmatprep.subr.mxu0 0.0
        %1261 = vmatpush1.msra.mxu0 0.0
        %1262 = vmatprep.subr.mxu0 0.0
        %1263 = vmatpush1.msra.mxu0 0.0
        %1264 = vmatprep.subr.mxu0 0.0
        %1265 = vmatpush1.msra.mxu0 0.0
        %1266 = vmatprep.subr.mxu0 0.0
        %1267 = vmatpush1.msra.mxu0 0.0
        %1268 = vmatprep.subr.mxu0 0.0
        %1269 = vmatpush1.msra.mxu0 0.0
        %1270 = vmatprep.subr.mxu0 0.0
        %1271 = vmatpush1.msra.mxu0 0.0
        %1272 = vmatprep.subr.mxu0 0.0
        %1273 = vmatpush1.msra.mxu0 0.0
        %1274 = vmatprep.subr.mxu0 0.0
        %1275 = vmatpush1.msra.mxu0 0.0
        %1276 = vmatprep.subr.mxu0 0.0
        %1277 = vmatpush1.msra.mxu0 0.0
        %1278 = vmatprep.subr.mxu0 0.0
        %1279 = vmatpush1.msra.mxu0 0.0
        %1280 = vmatprep.subr.mxu0 0.0
        %1281 = vmatpush1.msra.mxu0 0.0
        %1282 = vmatprep.subr.mxu0 0.0
        %1283 = vmatpush1.msra.mxu0 0.0
        %1284 = vmatprep.subr.mxu0 0.0
        %1285 = vmatpush1.msra.mxu0 0.0
        %1286 = vmatprep.subr.mxu0 0.0
        %1287 = vmatpush1.msra.mxu0 0.0
        %1288 = vmatprep.subr.mxu0 0.0
        %1289 = vmatpush1.msra.mxu0 0.0
        %1290 = vmatprep.mubr.f32.mxu0 0.0
        %1291 = vmatmul.mubr.f32.gmra.mrb[0].mxu0 %v1222
        %v1292 = vpop.f32.mrb[0].mxu0
        %v1293 = vadd.f32 %v603, %v1292
        %v1294 = vpop.f32.mrb[0].mxu0
        %1295 = vmatprep.mubr.f32.mxu0 0.0
        %1296 = vmatmul.mubr.f32.gmra.mrb[0].mxu0 %v1223
        %v1297 = vpop.f32.mrb[0].mxu0
        %v1298 = vadd.f32 %v608, %v1297
        %v1299 = vpop.f32.mrb[0].mxu0
        %1300 = vmatprep.mubr.f32.mxu0 0.0
        %1301 = vmatmul.mubr.f32.gmra.mrb[0].mxu0 %v1224
        %v1302 = vpop.f32.mrb[0].mxu0
        %v1303 = vadd.f32 %v613, %v1302
        %v1304 = vpop.f32.mrb[0].mxu0
        %1305 = vmatprep.mubr.f32.mxu0 0.0
        %1306 = vmatmul.mubr.f32.gmra.mrb[0].mxu0 %v1225
        %v1307 = vpop.f32.mrb[0].mxu0
        %v1308 = vadd.f32 %v618, %v1307
        %v1309 = vpop.f32.mrb[0].mxu0
        %1310 = vdwg.mxu0
        %v1311 = vld [vmem:[%s478] sm:$0x1]
        %v1313 = vlaneseq
        %v1314 = vshrl.u32 %v1313, 7
        %v1315 = vsub.s32 0, %v1314
        %v1316 = vrot.slane %v1311, %v1315
        %v1318 = vrcp.pop %v1316
        %v1319 = vmul.f32 %v1293, %v1318
        %v1320 = vmul.f32 %v1298, %v1318
        %v1321 = vmul.f32 %v1303, %v1318
        %v1322 = vmul.f32 %v1308, %v1318
        %1323 = vst [vmem:[%s472] sm:$0xff] %v1319
        %1324 = vst [vmem:[%s472 + $0x8] sm:$0xff] %v1320
        %1325 = vst [vmem:[%s472 + $0x10] sm:$0xff] %v1321
        %1326 = vst [vmem:[%s472 + $0x18] sm:$0xff] %v1322
        %v1327 = vmul.f32 %v1190, %v903
        %v1328 = vmul.f32 %v1191, %v909
        %v1329 = vmul.f32 %v1192, %v915
        %v1330 = vmul.f32 %v1193, %v921
        %v1331 = vmul.f32 %v1194, %v903
        %v1332 = vmul.f32 %v1195, %v909
        %v1333 = vmul.f32 %v1196, %v915
        %v1334 = vmul.f32 %v1197, %v921
        %v1335 = vmul.f32 %v1198, %v903
        %v1336 = vmul.f32 %v1199, %v909
        %v1337 = vmul.f32 %v1200, %v915
        %v1338 = vmul.f32 %v1201, %v921
        %v1339 = vmul.f32 %v1202, %v903
        %v1340 = vmul.f32 %v1203, %v909
        %v1341 = vmul.f32 %v1204, %v915
        %v1342 = vmul.f32 %v1205, %v921
        %s1343 = scalar_lea.vmem %s416, 32 [#allocation7]
        %v1344 = vld [vmem:[%s1343] sm:$0xff]
        %v1345 = vld [vmem:[%s1343 + $0x8] sm:$0xff]
        %v1346 = vld [vmem:[%s1343 + $0x10] sm:$0xff]
        %v1347 = vld [vmem:[%s1343 + $0x18] sm:$0xff]
        %1348 = vmatprep.subr.mxu0 0.0
        %1349 = vmatpush1.msra.mxu0 %v1327
        %1350 = vmatprep.subr.mxu0 0.0
        %1351 = vmatpush1.msra.mxu0 %v1328
        %1352 = vmatprep.subr.mxu0 0.0
        %1353 = vmatpush1.msra.mxu0 %v1329
        %1354 = vmatprep.subr.mxu0 0.0
        %1355 = vmatpush1.msra.mxu0 %v1330
        %1356 = vmatprep.subr.mxu0 0.0
        %1357 = vmatpush1.msra.mxu0 %v1331
        %1358 = vmatprep.subr.mxu0 0.0
        %1359 = vmatpush1.msra.mxu0 %v1332
        %1360 = vmatprep.subr.mxu0 0.0
        %1361 = vmatpush1.msra.mxu0 %v1333
        %1362 = vmatprep.subr.mxu0 0.0
        %1363 = vmatpush1.msra.mxu0 %v1334
        %1364 = vmatprep.subr.mxu0 0.0
        %1365 = vmatpush1.msra.mxu0 %v1335
        %1366 = vmatprep.subr.mxu0 0.0
        %1367 = vmatpush1.msra.mxu0 %v1336
        %1368 = vmatprep.subr.mxu0 0.0
        %1369 = vmatpush1.msra.mxu0 %v1337
        %1370 = vmatprep.subr.mxu0 0.0
        %1371 = vmatpush1.msra.mxu0 %v1338
        %1372 = vmatprep.subr.mxu0 0.0
        %1373 = vmatpush1.msra.mxu0 %v1339
        %1374 = vmatprep.subr.mxu0 0.0
        %1375 = vmatpush1.msra.mxu0 %v1340
        %1376 = vmatprep.subr.mxu0 0.0
        %1377 = vmatpush1.msra.mxu0 %v1341
        %1378 = vmatprep.subr.mxu0 0.0
        %1379 = vmatpush1.msra.mxu0 %v1342
        %1380 = vmatprep.subr.mxu0 0.0
        %1381 = vmatpush1.msra.mxu0 0.0
        %1382 = vmatprep.subr.mxu0 0.0
        %1383 = vmatpush1.msra.mxu0 0.0
        %1384 = vmatprep.subr.mxu0 0.0
        %1385 = vmatpush1.msra.mxu0 0.0
        %1386 = vmatprep.subr.mxu0 0.0
        %1387 = vmatpush1.msra.mxu0 0.0
        %1388 = vmatprep.subr.mxu0 0.0
        %1389 = vmatpush1.msra.mxu0 0.0
        %1390 = vmatprep.subr.mxu0 0.0
        %1391 = vmatpush1.msra.mxu0 0.0
        %1392 = vmatprep.subr.mxu0 0.0
        %1393 = vmatpush1.msra.mxu0 0.0
        %1394 = vmatprep.subr.mxu0 0.0
        %1395 = vmatpush1.msra.mxu0 0.0
        %1396 = vmatprep.subr.mxu0 0.0
        %1397 = vmatpush1.msra.mxu0 0.0
        %1398 = vmatprep.subr.mxu0 0.0
        %1399 = vmatpush1.msra.mxu0 0.0
        %1400 = vmatprep.subr.mxu0 0.0
        %1401 = vmatpush1.msra.mxu0 0.0
        %1402 = vmatprep.subr.mxu0 0.0
        %1403 = vmatpush1.msra.mxu0 0.0
        %1404 = vmatprep.subr.mxu0 0.0
        %1405 = vmatpush1.msra.mxu0 0.0
        %1406 = vmatprep.subr.mxu0 0.0
        %1407 = vmatpush1.msra.mxu0 0.0
        %1408 = vmatprep.subr.mxu0 0.0
        %1409 = vmatpush1.msra.mxu0 0.0
        %1410 = vmatprep.subr.mxu0 0.0
        %1411 = vmatpush1.msra.mxu0 0.0
        %1412 = vmatprep.mubr.f32.mxu0 0.0
        %1413 = vmatmul.mubr.f32.gmra.mrb[0].mxu0 %v1344
        %v1414 = vpop.f32.mrb[0].mxu0
        %v1415 = vadd.f32 %v623, %v1414
        %v1416 = vpop.f32.mrb[0].mxu0
        %1417 = vmatprep.mubr.f32.mxu0 0.0
        %1418 = vmatmul.mubr.f32.gmra.mrb[0].mxu0 %v1345
        %v1419 = vpop.f32.mrb[0].mxu0
        %v1420 = vadd.f32 %v628, %v1419
        %v1421 = vpop.f32.mrb[0].mxu0
        %1422 = vmatprep.mubr.f32.mxu0 0.0
        %1423 = vmatmul.mubr.f32.gmra.mrb[0].mxu0 %v1346
        %v1424 = vpop.f32.mrb[0].mxu0
        %v1425 = vadd.f32 %v633, %v1424
        %v1426 = vpop.f32.mrb[0].mxu0
        %1427 = vmatprep.mubr.f32.mxu0 0.0
        %1428 = vmatmul.mubr.f32.gmra.mrb[0].mxu0 %v1347
        %v1429 = vpop.f32.mrb[0].mxu0
        %v1430 = vadd.f32 %v638, %v1429
        %v1431 = vpop.f32.mrb[0].mxu0
        %1432 = vdwg.mxu0
        %s1433 = scalar_lea.vmem %s478, 1
        %v1434 = vld [vmem:[%s1433] sm:$0x1]
        %v1436 = vlaneseq
        %v1437 = vshrl.u32 %v1436, 7
        %v1438 = vsub.s32 0, %v1437
        %v1439 = vrot.slane %v1434, %v1438
        %v1441 = vrcp.pop %v1439
        %v1442 = vmul.f32 %v1415, %v1441
        %v1443 = vmul.f32 %v1420, %v1441
        %v1444 = vmul.f32 %v1425, %v1441
        %v1445 = vmul.f32 %v1430, %v1441
        %s1446 = scalar_lea.vmem %s472, 32 [#allocation11]
        %1447 = vst [vmem:[%s1446] sm:$0xff] %v1442
        %1448 = vst [vmem:[%s1446 + $0x8] sm:$0xff] %v1443
        %1449 = vst [vmem:[%s1446 + $0x10] sm:$0xff] %v1444
        %1450 = vst [vmem:[%s1446 + $0x18] sm:$0xff] %v1445
        %v1451 = vmul.f32 %v1190, %v990
        %v1452 = vmul.f32 %v1191, %v996
        %v1453 = vmul.f32 %v1192, %v1002
        %v1454 = vmul.f32 %v1193, %v1008
        %v1455 = vmul.f32 %v1194, %v990
        %v1456 = vmul.f32 %v1195, %v996
        %v1457 = vmul.f32 %v1196, %v1002
        %v1458 = vmul.f32 %v1197, %v1008
        %v1459 = vmul.f32 %v1198, %v990
        %v1460 = vmul.f32 %v1199, %v996
        %v1461 = vmul.f32 %v1200, %v1002
        %v1462 = vmul.f32 %v1201, %v1008
        %v1463 = vmul.f32 %v1202, %v990
        %v1464 = vmul.f32 %v1203, %v996
        %v1465 = vmul.f32 %v1204, %v1002
        %v1466 = vmul.f32 %v1205, %v1008
        %s1467 = scalar_lea.vmem %s416, 64 [#allocation7]
        %v1468 = vld [vmem:[%s1467] sm:$0xff]
        %v1469 = vld [vmem:[%s1467 + $0x8] sm:$0xff]
        %v1470 = vld [vmem:[%s1467 + $0x10] sm:$0xff]
        %v1471 = vld [vmem:[%s1467 + $0x18] sm:$0xff]
        %1472 = vmatprep.subr.mxu0 0.0
        %1473 = vmatpush1.msra.mxu0 %v1451
        %1474 = vmatprep.subr.mxu0 0.0
        %1475 = vmatpush1.msra.mxu0 %v1452
        %1476 = vmatprep.subr.mxu0 0.0
        %1477 = vmatpush1.msra.mxu0 %v1453
        %1478 = vmatprep.subr.mxu0 0.0
        %1479 = vmatpush1.msra.mxu0 %v1454
        %1480 = vmatprep.subr.mxu0 0.0
        %1481 = vmatpush1.msra.mxu0 %v1455
        %1482 = vmatprep.subr.mxu0 0.0
        %1483 = vmatpush1.msra.mxu0 %v1456
        %1484 = vmatprep.subr.mxu0 0.0
        %1485 = vmatpush1.msra.mxu0 %v1457
        %1486 = vmatprep.subr.mxu0 0.0
        %1487 = vmatpush1.msra.mxu0 %v1458
        %1488 = vmatprep.subr.mxu0 0.0
        %1489 = vmatpush1.msra.mxu0 %v1459
        %1490 = vmatprep.subr.mxu0 0.0
        %1491 = vmatpush1.msra.mxu0 %v1460
        %1492 = vmatprep.subr.mxu0 0.0
        %1493 = vmatpush1.msra.mxu0 %v1461
        %1494 = vmatprep.subr.mxu0 0.0
        %1495 = vmatpush1.msra.mxu0 %v1462
        %1496 = vmatprep.subr.mxu0 0.0
        %1497 = vmatpush1.msra.mxu0 %v1463
        %1498 = vmatprep.subr.mxu0 0.0
        %1499 = vmatpush1.msra.mxu0 %v1464
        %1500 = vmatprep.subr.mxu0 0.0
        %1501 = vmatpush1.msra.mxu0 %v1465
        %1502 = vmatprep.subr.mxu0 0.0
        %1503 = vmatpush1.msra.mxu0 %v1466
        %1504 = vmatprep.subr.mxu0 0.0
        %1505 = vmatpush1.msra.mxu0 0.0
        %1506 = vmatprep.subr.mxu0 0.0
        %1507 = vmatpush1.msra.mxu0 0.0
        %1508 = vmatprep.subr.mxu0 0.0
        %1509 = vmatpush1.msra.mxu0 0.0
        %1510 = vmatprep.subr.mxu0 0.0
        %1511 = vmatpush1.msra.mxu0 0.0
        %1512 = vmatprep.subr.mxu0 0.0
        %1513 = vmatpush1.msra.mxu0 0.0
        %1514 = vmatprep.subr.mxu0 0.0
        %1515 = vmatpush1.msra.mxu0 0.0
        %1516 = vmatprep.subr.mxu0 0.0
        %1517 = vmatpush1.msra.mxu0 0.0
        %1518 = vmatprep.subr.mxu0 0.0
        %1519 = vmatpush1.msra.mxu0 0.0
        %1520 = vmatprep.subr.mxu0 0.0
        %1521 = vmatpush1.msra.mxu0 0.0
        %1522 = vmatprep.subr.mxu0 0.0
        %1523 = vmatpush1.msra.mxu0 0.0
        %1524 = vmatprep.subr.mxu0 0.0
        %1525 = vmatpush1.msra.mxu0 0.0
        %1526 = vmatprep.subr.mxu0 0.0
        %1527 = vmatpush1.msra.mxu0 0.0
        %1528 = vmatprep.subr.mxu0 0.0
        %1529 = vmatpush1.msra.mxu0 0.0
        %1530 = vmatprep.subr.mxu0 0.0
        %1531 = vmatpush1.msra.mxu0 0.0
        %1532 = vmatprep.subr.mxu0 0.0
        %1533 = vmatpush1.msra.mxu0 0.0
        %1534 = vmatprep.subr.mxu0 0.0
        %1535 = vmatpush1.msra.mxu0 0.0
        %1536 = vmatprep.mubr.f32.mxu0 0.0
        %1537 = vmatmul.mubr.f32.gmra.mrb[0].mxu0 %v1468
        %v1538 = vpop.f32.mrb[0].mxu0
        %v1539 = vadd.f32 %v643, %v1538
        %v1540 = vpop.f32.mrb[0].mxu0
        %1541 = vmatprep.mubr.f32.mxu0 0.0
        %1542 = vmatmul.mubr.f32.gmra.mrb[0].mxu0 %v1469
        %v1543 = vpop.f32.mrb[0].mxu0
        %v1544 = vadd.f32 %v648, %v1543
        %v1545 = vpop.f32.mrb[0].mxu0
        %1546 = vmatprep.mubr.f32.mxu0 0.0
        %1547 = vmatmul.mubr.f32.gmra.mrb[0].mxu0 %v1470
        %v1548 = vpop.f32.mrb[0].mxu0
        %v1549 = vadd.f32 %v653, %v1548
        %v1550 = vpop.f32.mrb[0].mxu0
        %1551 = vmatprep.mubr.f32.mxu0 0.0
        %1552 = vmatmul.mubr.f32.gmra.mrb[0].mxu0 %v1471
        %v1553 = vpop.f32.mrb[0].mxu0
        %v1554 = vadd.f32 %v658, %v1553
        %v1555 = vpop.f32.mrb[0].mxu0
        %1556 = vdwg.mxu0
        %s1557 = scalar_lea.vmem %s478, 2
        %v1558 = vld [vmem:[%s1557] sm:$0x1]
        %v1560 = vlaneseq
        %v1561 = vshrl.u32 %v1560, 7
        %v1562 = vsub.s32 0, %v1561
        %v1563 = vrot.slane %v1558, %v1562
        %v1565 = vrcp.pop %v1563
        %v1566 = vmul.f32 %v1539, %v1565
        %v1567 = vmul.f32 %v1544, %v1565
        %v1568 = vmul.f32 %v1549, %v1565
        %v1569 = vmul.f32 %v1554, %v1565
        %s1570 = scalar_lea.vmem %s472, 64 [#allocation11]
        %1571 = vst [vmem:[%s1570] sm:$0xff] %v1566
        %1572 = vst [vmem:[%s1570 + $0x8] sm:$0xff] %v1567
        %1573 = vst [vmem:[%s1570 + $0x10] sm:$0xff] %v1568
        %1574 = vst [vmem:[%s1570 + $0x18] sm:$0xff] %v1569
        %v1575 = vmul.f32 %v1190, %v992
        %v1576 = vmul.f32 %v1191, %v998
        %v1577 = vmul.f32 %v1192, %v1004
        %v1578 = vmul.f32 %v1193, %v1010
        %v1579 = vmul.f32 %v1194, %v992
        %v1580 = vmul.f32 %v1195, %v998
        %v1581 = vmul.f32 %v1196, %v1004
        %v1582 = vmul.f32 %v1197, %v1010
        %v1583 = vmul.f32 %v1198, %v992
        %v1584 = vmul.f32 %v1199, %v998
        %v1585 = vmul.f32 %v1200, %v1004
        %v1586 = vmul.f32 %v1201, %v1010
        %v1587 = vmul.f32 %v1202, %v992
        %v1588 = vmul.f32 %v1203, %v998
        %v1589 = vmul.f32 %v1204, %v1004
        %v1590 = vmul.f32 %v1205, %v1010
        %s1591 = scalar_lea.vmem %s416, 96 [#allocation7]
        %v1592 = vld [vmem:[%s1591] sm:$0xff]
        %v1593 = vld [vmem:[%s1591 + $0x8] sm:$0xff]
        %v1594 = vld [vmem:[%s1591 + $0x10] sm:$0xff]
        %v1595 = vld [vmem:[%s1591 + $0x18] sm:$0xff]
        %1596 = vmatprep.subr.mxu0 0.0
        %1597 = vmatpush1.msra.mxu0 %v1575
        %1598 = vmatprep.subr.mxu0 0.0
        %1599 = vmatpush1.msra.mxu0 %v1576
        %1600 = vmatprep.subr.mxu0 0.0
        %1601 = vmatpush1.msra.mxu0 %v1577
        %1602 = vmatprep.subr.mxu0 0.0
        %1603 = vmatpush1.msra.mxu0 %v1578
        %1604 = vmatprep.subr.mxu0 0.0
        %1605 = vmatpush1.msra.mxu0 %v1579
        %1606 = vmatprep.subr.mxu0 0.0
        %1607 = vmatpush1.msra.mxu0 %v1580
        %1608 = vmatprep.subr.mxu0 0.0
        %1609 = vmatpush1.msra.mxu0 %v1581
        %1610 = vmatprep.subr.mxu0 0.0
        %1611 = vmatpush1.msra.mxu0 %v1582
        %1612 = vmatprep.subr.mxu0 0.0
        %1613 = vmatpush1.msra.mxu0 %v1583
        %1614 = vmatprep.subr.mxu0 0.0
        %1615 = vmatpush1.msra.mxu0 %v1584
        %1616 = vmatprep.subr.mxu0 0.0
        %1617 = vmatpush1.msra.mxu0 %v1585
        %1618 = vmatprep.subr.mxu0 0.0
        %1619 = vmatpush1.msra.mxu0 %v1586
        %1620 = vmatprep.subr.mxu0 0.0
        %1621 = vmatpush1.msra.mxu0 %v1587
        %1622 = vmatprep.subr.mxu0 0.0
        %1623 = vmatpush1.msra.mxu0 %v1588
        %1624 = vmatprep.subr.mxu0 0.0
        %1625 = vmatpush1.msra.mxu0 %v1589
        %1626 = vmatprep.subr.mxu0 0.0
        %1627 = vmatpush1.msra.mxu0 %v1590
        %1628 = vmatprep.subr.mxu0 0.0
        %1629 = vmatpush1.msra.mxu0 0.0
        %1630 = vmatprep.subr.mxu0 0.0
        %1631 = vmatpush1.msra.mxu0 0.0
        %1632 = vmatprep.subr.mxu0 0.0
        %1633 = vmatpush1.msra.mxu0 0.0
        %1634 = vmatprep.subr.mxu0 0.0
        %1635 = vmatpush1.msra.mxu0 0.0
        %1636 = vmatprep.subr.mxu0 0.0
        %1637 = vmatpush1.msra.mxu0 0.0
        %1638 = vmatprep.subr.mxu0 0.0
        %1639 = vmatpush1.msra.mxu0 0.0
        %1640 = vmatprep.subr.mxu0 0.0
        %1641 = vmatpush1.msra.mxu0 0.0
        %1642 = vmatprep.subr.mxu0 0.0
        %1643 = vmatpush1.msra.mxu0 0.0
        %1644 = vmatprep.subr.mxu0 0.0
        %1645 = vmatpush1.msra.mxu0 0.0
        %1646 = vmatprep.subr.mxu0 0.0
        %1647 = vmatpush1.msra.mxu0 0.0
        %1648 = vmatprep.subr.mxu0 0.0
        %1649 = vmatpush1.msra.mxu0 0.0
        %1650 = vmatprep.subr.mxu0 0.0
        %1651 = vmatpush1.msra.mxu0 0.0
        %1652 = vmatprep.subr.mxu0 0.0
        %1653 = vmatpush1.msra.mxu0 0.0
        %1654 = vmatprep.subr.mxu0 0.0
        %1655 = vmatpush1.msra.mxu0 0.0
        %1656 = vmatprep.subr.mxu0 0.0
        %1657 = vmatpush1.msra.mxu0 0.0
        %1658 = vmatprep.subr.mxu0 0.0
        %1659 = vmatpush1.msra.mxu0 0.0
        %1660 = vmatprep.mubr.f32.mxu0 0.0
        %1661 = vmatmul.mubr.f32.gmra.mrb[0].mxu0 %v1592
        %v1662 = vpop.f32.mrb[0].mxu0
        %v1663 = vadd.f32 %v663, %v1662
        %v1664 = vpop.f32.mrb[0].mxu0
        %1665 = vmatprep.mubr.f32.mxu0 0.0
        %1666 = vmatmul.mubr.f32.gmra.mrb[0].mxu0 %v1593
        %v1667 = vpop.f32.mrb[0].mxu0
        %v1668 = vadd.f32 %v668, %v1667
        %v1669 = vpop.f32.mrb[0].mxu0
        %1670 = vmatprep.mubr.f32.mxu0 0.0
        %1671 = vmatmul.mubr.f32.gmra.mrb[0].mxu0 %v1594
        %v1672 = vpop.f32.mrb[0].mxu0
        %v1673 = vadd.f32 %v673, %v1672
        %v1674 = vpop.f32.mrb[0].mxu0
        %1675 = vmatprep.mubr.f32.mxu0 0.0
        %1676 = vmatmul.mubr.f32.gmra.mrb[0].mxu0 %v1595
        %v1677 = vpop.f32.mrb[0].mxu0
        %v1678 = vadd.f32 %v678, %v1677
        %v1679 = vpop.f32.mrb[0].mxu0
        %1680 = vdwg.mxu0
        %s1681 = scalar_lea.vmem %s478, 3
        %v1682 = vld [vmem:[%s1681] sm:$0x1]
        %v1684 = vlaneseq
        %v1685 = vshrl.u32 %v1684, 7
        %v1686 = vsub.s32 0, %v1685
        %v1687 = vrot.slane %v1682, %v1686
        %v1689 = vrcp.pop %v1687
        %v1690 = vmul.f32 %v1663, %v1689
        %v1691 = vmul.f32 %v1668, %v1689
        %v1692 = vmul.f32 %v1673, %v1689
        %v1693 = vmul.f32 %v1678, %v1689
        %s1694 = scalar_lea.vmem %s472, 96 [#allocation11]
        %1695 = vst [vmem:[%s1694] sm:$0xff] %v1690
        %1696 = vst [vmem:[%s1694 + $0x8] sm:$0xff] %v1691
        %1697 = vst [vmem:[%s1694 + $0x10] sm:$0xff] %v1692
        %1698 = vst [vmem:[%s1694 + $0x18] sm:$0xff] %v1693
        %v1699 = vmul.f32 %v1190, %v1079
        %v1700 = vmul.f32 %v1191, %v1085
        %v1701 = vmul.f32 %v1192, %v1091
        %v1702 = vmul.f32 %v1193, %v1097
        %v1703 = vmul.f32 %v1194, %v1079
        %v1704 = vmul.f32 %v1195, %v1085
        %v1705 = vmul.f32 %v1196, %v1091
        %v1706 = vmul.f32 %v1197, %v1097
        %v1707 = vmul.f32 %v1198, %v1079
        %v1708 = vmul.f32 %v1199, %v1085
        %v1709 = vmul.f32 %v1200, %v1091
        %v1710 = vmul.f32 %v1201, %v1097
        %v1711 = vmul.f32 %v1202, %v1079
        %v1712 = vmul.f32 %v1203, %v1085
        %v1713 = vmul.f32 %v1204, %v1091
        %v1714 = vmul.f32 %v1205, %v1097
        %s1715 = scalar_lea.vmem %s416, 128 [#allocation7]
        %v1716 = vld [vmem:[%s1715] sm:$0xff]
        %v1717 = vld [vmem:[%s1715 + $0x8] sm:$0xff]
        %v1718 = vld [vmem:[%s1715 + $0x10] sm:$0xff]
        %v1719 = vld [vmem:[%s1715 + $0x18] sm:$0xff]
        %1720 = vmatprep.subr.mxu0 0.0
        %1721 = vmatpush1.msra.mxu0 %v1699
        %1722 = vmatprep.subr.mxu0 0.0
        %1723 = vmatpush1.msra.mxu0 %v1700
        %1724 = vmatprep.subr.mxu0 0.0
        %1725 = vmatpush1.msra.mxu0 %v1701
        %1726 = vmatprep.subr.mxu0 0.0
        %1727 = vmatpush1.msra.mxu0 %v1702
        %1728 = vmatprep.subr.mxu0 0.0
        %1729 = vmatpush1.msra.mxu0 %v1703
        %1730 = vmatprep.subr.mxu0 0.0
        %1731 = vmatpush1.msra.mxu0 %v1704
        %1732 = vmatprep.subr.mxu0 0.0
        %1733 = vmatpush1.msra.mxu0 %v1705
        %1734 = vmatprep.subr.mxu0 0.0
        %1735 = vmatpush1.msra.mxu0 %v1706
        %1736 = vmatprep.subr.mxu0 0.0
        %1737 = vmatpush1.msra.mxu0 %v1707
        %1738 = vmatprep.subr.mxu0 0.0
        %1739 = vmatpush1.msra.mxu0 %v1708
        %1740 = vmatprep.subr.mxu0 0.0
        %1741 = vmatpush1.msra.mxu0 %v1709
        %1742 = vmatprep.subr.mxu0 0.0
        %1743 = vmatpush1.msra.mxu0 %v1710
        %1744 = vmatprep.subr.mxu0 0.0
        %1745 = vmatpush1.msra.mxu0 %v1711
        %1746 = vmatprep.subr.mxu0 0.0
        %1747 = vmatpush1.msra.mxu0 %v1712
        %1748 = vmatprep.subr.mxu0 0.0
        %1749 = vmatpush1.msra.mxu0 %v1713
        %1750 = vmatprep.subr.mxu0 0.0
        %1751 = vmatpush1.msra.mxu0 %v1714
        %1752 = vmatprep.subr.mxu0 0.0
        %1753 = vmatpush1.msra.mxu0 0.0
        %1754 = vmatprep.subr.mxu0 0.0
        %1755 = vmatpush1.msra.mxu0 0.0
        %1756 = vmatprep.subr.mxu0 0.0
        %1757 = vmatpush1.msra.mxu0 0.0
        %1758 = vmatprep.subr.mxu0 0.0
        %1759 = vmatpush1.msra.mxu0 0.0
        %1760 = vmatprep.subr.mxu0 0.0
        %1761 = vmatpush1.msra.mxu0 0.0
        %1762 = vmatprep.subr.mxu0 0.0
        %1763 = vmatpush1.msra.mxu0 0.0
        %1764 = vmatprep.subr.mxu0 0.0
        %1765 = vmatpush1.msra.mxu0 0.0
        %1766 = vmatprep.subr.mxu0 0.0
        %1767 = vmatpush1.msra.mxu0 0.0
        %1768 = vmatprep.subr.mxu0 0.0
        %1769 = vmatpush1.msra.mxu0 0.0
        %1770 = vmatprep.subr.mxu0 0.0
        %1771 = vmatpush1.msra.mxu0 0.0
        %1772 = vmatprep.subr.mxu0 0.0
        %1773 = vmatpush1.msra.mxu0 0.0
        %1774 = vmatprep.subr.mxu0 0.0
        %1775 = vmatpush1.msra.mxu0 0.0
        %1776 = vmatprep.subr.mxu0 0.0
        %1777 = vmatpush1.msra.mxu0 0.0
        %1778 = vmatprep.subr.mxu0 0.0
        %1779 = vmatpush1.msra.mxu0 0.0
        %1780 = vmatprep.subr.mxu0 0.0
        %1781 = vmatpush1.msra.mxu0 0.0
        %1782 = vmatprep.subr.mxu0 0.0
        %1783 = vmatpush1.msra.mxu0 0.0
        %1784 = vmatprep.mubr.f32.mxu0 0.0
        %1785 = vmatmul.mubr.f32.gmra.mrb[0].mxu0 %v1716
        %v1786 = vpop.f32.mrb[0].mxu0
        %v1787 = vadd.f32 %v683, %v1786
        %v1788 = vpop.f32.mrb[0].mxu0
        %1789 = vmatprep.mubr.f32.mxu0 0.0
        %1790 = vmatmul.mubr.f32.gmra.mrb[0].mxu0 %v1717
        %v1791 = vpop.f32.mrb[0].mxu0
        %v1792 = vadd.f32 %v688, %v1791
        %v1793 = vpop.f32.mrb[0].mxu0
        %1794 = vmatprep.mubr.f32.mxu0 0.0
        %1795 = vmatmul.mubr.f32.gmra.mrb[0].mxu0 %v1718
        %v1796 = vpop.f32.mrb[0].mxu0
        %v1797 = vadd.f32 %v693, %v1796
        %v1798 = vpop.f32.mrb[0].mxu0
        %1799 = vmatprep.mubr.f32.mxu0 0.0
        %1800 = vmatmul.mubr.f32.gmra.mrb[0].mxu0 %v1719
        %v1801 = vpop.f32.mrb[0].mxu0
        %v1802 = vadd.f32 %v698, %v1801
        %v1803 = vpop.f32.mrb[0].mxu0
        %1804 = vdwg.mxu0
        %s1805 = scalar_lea.vmem %s478, 4
        %v1806 = vld [vmem:[%s1805] sm:$0x1]
        %v1808 = vlaneseq
        %v1809 = vshrl.u32 %v1808, 7
        %v1810 = vsub.s32 0, %v1809
        %v1811 = vrot.slane %v1806, %v1810
        %v1813 = vrcp.pop %v1811
        %v1814 = vmul.f32 %v1787, %v1813
        %v1815 = vmul.f32 %v1792, %v1813
        %v1816 = vmul.f32 %v1797, %v1813
        %v1817 = vmul.f32 %v1802, %v1813
        %s1818 = scalar_lea.vmem %s472, 128 [#allocation11]
        %1819 = vst [vmem:[%s1818] sm:$0xff] %v1814
        %1820 = vst [vmem:[%s1818 + $0x8] sm:$0xff] %v1815
        %1821 = vst [vmem:[%s1818 + $0x10] sm:$0xff] %v1816
        %1822 = vst [vmem:[%s1818 + $0x18] sm:$0xff] %v1817
        %v1823 = vmul.f32 %v1190, %v1081
        %v1824 = vmul.f32 %v1191, %v1087
        %v1825 = vmul.f32 %v1192, %v1093
        %v1826 = vmul.f32 %v1193, %v1099
        %v1827 = vmul.f32 %v1194, %v1081
        %v1828 = vmul.f32 %v1195, %v1087
        %v1829 = vmul.f32 %v1196, %v1093
        %v1830 = vmul.f32 %v1197, %v1099
        %v1831 = vmul.f32 %v1198, %v1081
        %v1832 = vmul.f32 %v1199, %v1087
        %v1833 = vmul.f32 %v1200, %v1093
        %v1834 = vmul.f32 %v1201, %v1099
        %v1835 = vmul.f32 %v1202, %v1081
        %v1836 = vmul.f32 %v1203, %v1087
        %v1837 = vmul.f32 %v1204, %v1093
        %v1838 = vmul.f32 %v1205, %v1099
        %s1839 = scalar_lea.vmem %s416, 160 [#allocation7]
        %v1840 = vld [vmem:[%s1839] sm:$0xff]
        %v1841 = vld [vmem:[%s1839 + $0x8] sm:$0xff]
        %v1842 = vld [vmem:[%s1839 + $0x10] sm:$0xff]
        %v1843 = vld [vmem:[%s1839 + $0x18] sm:$0xff]
        %1844 = vmatprep.subr.mxu0 0.0
        %1845 = vmatpush1.msra.mxu0 %v1823
        %1846 = vmatprep.subr.mxu0 0.0
        %1847 = vmatpush1.msra.mxu0 %v1824
        %1848 = vmatprep.subr.mxu0 0.0
        %1849 = vmatpush1.msra.mxu0 %v1825
        %1850 = vmatprep.subr.mxu0 0.0
        %1851 = vmatpush1.msra.mxu0 %v1826
        %1852 = vmatprep.subr.mxu0 0.0
        %1853 = vmatpush1.msra.mxu0 %v1827
        %1854 = vmatprep.subr.mxu0 0.0
        %1855 = vmatpush1.msra.mxu0 %v1828
        %1856 = vmatprep.subr.mxu0 0.0
        %1857 = vmatpush1.msra.mxu0 %v1829
        %1858 = vmatprep.subr.mxu0 0.0
        %1859 = vmatpush1.msra.mxu0 %v1830
        %1860 = vmatprep.subr.mxu0 0.0
        %1861 = vmatpush1.msra.mxu0 %v1831
        %1862 = vmatprep.subr.mxu0 0.0
        %1863 = vmatpush1.msra.mxu0 %v1832
        %1864 = vmatprep.subr.mxu0 0.0
        %1865 = vmatpush1.msra.mxu0 %v1833
        %1866 = vmatprep.subr.mxu0 0.0
        %1867 = vmatpush1.msra.mxu0 %v1834
        %1868 = vmatprep.subr.mxu0 0.0
        %1869 = vmatpush1.msra.mxu0 %v1835
        %1870 = vmatprep.subr.mxu0 0.0
        %1871 = vmatpush1.msra.mxu0 %v1836
        %1872 = vmatprep.subr.mxu0 0.0
        %1873 = vmatpush1.msra.mxu0 %v1837
        %1874 = vmatprep.subr.mxu0 0.0
        %1875 = vmatpush1.msra.mxu0 %v1838
        %1876 = vmatprep.subr.mxu0 0.0
        %1877 = vmatpush1.msra.mxu0 0.0
        %1878 = vmatprep.subr.mxu0 0.0
        %1879 = vmatpush1.msra.mxu0 0.0
        %1880 = vmatprep.subr.mxu0 0.0
        %1881 = vmatpush1.msra.mxu0 0.0
        %1882 = vmatprep.subr.mxu0 0.0
        %1883 = vmatpush1.msra.mxu0 0.0
        %1884 = vmatprep.subr.mxu0 0.0
        %1885 = vmatpush1.msra.mxu0 0.0
        %1886 = vmatprep.subr.mxu0 0.0
        %1887 = vmatpush1.msra.mxu0 0.0
        %1888 = vmatprep.subr.mxu0 0.0
        %1889 = vmatpush1.msra.mxu0 0.0
        %1890 = vmatprep.subr.mxu0 0.0
        %1891 = vmatpush1.msra.mxu0 0.0
        %1892 = vmatprep.subr.mxu0 0.0
        %1893 = vmatpush1.msra.mxu0 0.0
        %1894 = vmatprep.subr.mxu0 0.0
        %1895 = vmatpush1.msra.mxu0 0.0
        %1896 = vmatprep.subr.mxu0 0.0
        %1897 = vmatpush1.msra.mxu0 0.0
        %1898 = vmatprep.subr.mxu0 0.0
        %1899 = vmatpush1.msra.mxu0 0.0
        %1900 = vmatprep.subr.mxu0 0.0
        %1901 = vmatpush1.msra.mxu0 0.0
        %1902 = vmatprep.subr.mxu0 0.0
        %1903 = vmatpush1.msra.mxu0 0.0
        %1904 = vmatprep.subr.mxu0 0.0
        %1905 = vmatpush1.msra.mxu0 0.0
        %1906 = vmatprep.subr.mxu0 0.0
        %1907 = vmatpush1.msra.mxu0 0.0
        %1908 = vmatprep.mubr.f32.mxu0 0.0
        %1909 = vmatmul.mubr.f32.gmra.mrb[0].mxu0 %v1840
        %v1910 = vpop.f32.mrb[0].mxu0
        %v1911 = vadd.f32 %v703, %v1910
        %v1912 = vpop.f32.mrb[0].mxu0
        %1913 = vmatprep.mubr.f32.mxu0 0.0
        %1914 = vmatmul.mubr.f32.gmra.mrb[0].mxu0 %v1841
        %v1915 = vpop.f32.mrb[0].mxu0
        %v1916 = vadd.f32 %v708, %v1915
        %v1917 = vpop.f32.mrb[0].mxu0
        %1918 = vmatprep.mubr.f32.mxu0 0.0
        %1919 = vmatmul.mubr.f32.gmra.mrb[0].mxu0 %v1842
        %v1920 = vpop.f32.mrb[0].mxu0
        %v1921 = vadd.f32 %v713, %v1920
        %v1922 = vpop.f32.mrb[0].mxu0
        %1923 = vmatprep.mubr.f32.mxu0 0.0
        %1924 = vmatmul.mubr.f32.gmra.mrb[0].mxu0 %v1843
        %v1925 = vpop.f32.mrb[0].mxu0
        %v1926 = vadd.f32 %v718, %v1925
        %v1927 = vpop.f32.mrb[0].mxu0
        %1928 = vdwg.mxu0
        %s1929 = scalar_lea.vmem %s478, 5
        %v1930 = vld [vmem:[%s1929] sm:$0x1]
        %v1932 = vlaneseq
        %v1933 = vshrl.u32 %v1932, 7
        %v1934 = vsub.s32 0, %v1933
        %v1935 = vrot.slane %v1930, %v1934
        %v1937 = vrcp.pop %v1935
        %v1938 = vmul.f32 %v1911, %v1937
        %v1939 = vmul.f32 %v1916, %v1937
        %v1940 = vmul.f32 %v1921, %v1937
        %v1941 = vmul.f32 %v1926, %v1937
        %s1942 = scalar_lea.vmem %s472, 160 [#allocation11]
        %1943 = vst [vmem:[%s1942] sm:$0xff] %v1938
        %1944 = vst [vmem:[%s1942 + $0x8] sm:$0xff] %v1939
        %1945 = vst [vmem:[%s1942 + $0x10] sm:$0xff] %v1940
        %1946 = vst [vmem:[%s1942 + $0x18] sm:$0xff] %v1941
        %v1947 = vmul.f32 %v1190, %v1168
        %v1948 = vmul.f32 %v1191, %v1174
        %v1949 = vmul.f32 %v1192, %v1180
        %v1950 = vmul.f32 %v1193, %v1186
        %v1951 = vmul.f32 %v1194, %v1168
        %v1952 = vmul.f32 %v1195, %v1174
        %v1953 = vmul.f32 %v1196, %v1180
        %v1954 = vmul.f32 %v1197, %v1186
        %v1955 = vmul.f32 %v1198, %v1168
        %v1956 = vmul.f32 %v1199, %v1174
        %v1957 = vmul.f32 %v1200, %v1180
        %v1958 = vmul.f32 %v1201, %v1186
        %v1959 = vmul.f32 %v1202, %v1168
        %v1960 = vmul.f32 %v1203, %v1174
        %v1961 = vmul.f32 %v1204, %v1180
        %v1962 = vmul.f32 %v1205, %v1186
        %s1963 = scalar_lea.vmem %s416, 192 [#allocation7]
        %v1964 = vld [vmem:[%s1963] sm:$0xff]
        %v1965 = vld [vmem:[%s1963 + $0x8] sm:$0xff]
        %v1966 = vld [vmem:[%s1963 + $0x10] sm:$0xff]
        %v1967 = vld [vmem:[%s1963 + $0x18] sm:$0xff]
        %1968 = vmatprep.subr.mxu0 0.0
        %1969 = vmatpush1.msra.mxu0 %v1947
        %1970 = vmatprep.subr.mxu0 0.0
        %1971 = vmatpush1.msra.mxu0 %v1948
        %1972 = vmatprep.subr.mxu0 0.0
        %1973 = vmatpush1.msra.mxu0 %v1949
        %1974 = vmatprep.subr.mxu0 0.0
        %1975 = vmatpush1.msra.mxu0 %v1950
        %1976 = vmatprep.subr.mxu0 0.0
        %1977 = vmatpush1.msra.mxu0 %v1951
        %1978 = vmatprep.subr.mxu0 0.0
        %1979 = vmatpush1.msra.mxu0 %v1952
        %1980 = vmatprep.subr.mxu0 0.0
        %1981 = vmatpush1.msra.mxu0 %v1953
        %1982 = vmatprep.subr.mxu0 0.0
        %1983 = vmatpush1.msra.mxu0 %v1954
        %1984 = vmatprep.subr.mxu0 0.0
        %1985 = vmatpush1.msra.mxu0 %v1955
        %1986 = vmatprep.subr.mxu0 0.0
        %1987 = vmatpush1.msra.mxu0 %v1956
        %1988 = vmatprep.subr.mxu0 0.0
        %1989 = vmatpush1.msra.mxu0 %v1957
        %1990 = vmatprep.subr.mxu0 0.0
        %1991 = vmatpush1.msra.mxu0 %v1958
        %1992 = vmatprep.subr.mxu0 0.0
        %1993 = vmatpush1.msra.mxu0 %v1959
        %1994 = vmatprep.subr.mxu0 0.0
        %1995 = vmatpush1.msra.mxu0 %v1960
        %1996 = vmatprep.subr.mxu0 0.0
        %1997 = vmatpush1.msra.mxu0 %v1961
        %1998 = vmatprep.subr.mxu0 0.0
        %1999 = vmatpush1.msra.mxu0 %v1962
        %2000 = vmatprep.subr.mxu0 0.0
        %2001 = vmatpush1.msra.mxu0 0.0
        %2002 = vmatprep.subr.mxu0 0.0
        %2003 = vmatpush1.msra.mxu0 0.0
        %2004 = vmatprep.subr.mxu0 0.0
        %2005 = vmatpush1.msra.mxu0 0.0
        %2006 = vmatprep.subr.mxu0 0.0
        %2007 = vmatpush1.msra.mxu0 0.0
        %2008 = vmatprep.subr.mxu0 0.0
        %2009 = vmatpush1.msra.mxu0 0.0
        %2010 = vmatprep.subr.mxu0 0.0
        %2011 = vmatpush1.msra.mxu0 0.0
        %2012 = vmatprep.subr.mxu0 0.0
        %2013 = vmatpush1.msra.mxu0 0.0
        %2014 = vmatprep.subr.mxu0 0.0
        %2015 = vmatpush1.msra.mxu0 0.0
        %2016 = vmatprep.subr.mxu0 0.0
        %2017 = vmatpush1.msra.mxu0 0.0
        %2018 = vmatprep.subr.mxu0 0.0
        %2019 = vmatpush1.msra.mxu0 0.0
        %2020 = vmatprep.subr.mxu0 0.0
        %2021 = vmatpush1.msra.mxu0 0.0
        %2022 = vmatprep.subr.mxu0 0.0
        %2023 = vmatpush1.msra.mxu0 0.0
        %2024 = vmatprep.subr.mxu0 0.0
        %2025 = vmatpush1.msra.mxu0 0.0
        %2026 = vmatprep.subr.mxu0 0.0
        %2027 = vmatpush1.msra.mxu0 0.0
        %2028 = vmatprep.subr.mxu0 0.0
        %2029 = vmatpush1.msra.mxu0 0.0
        %2030 = vmatprep.subr.mxu0 0.0
        %2031 = vmatpush1.msra.mxu0 0.0
        %2032 = vmatprep.mubr.f32.mxu0 0.0
        %2033 = vmatmul.mubr.f32.gmra.mrb[0].mxu0 %v1964
        %v2034 = vpop.f32.mrb[0].mxu0
        %v2035 = vadd.f32 %v723, %v2034
        %v2036 = vpop.f32.mrb[0].mxu0
        %2037 = vmatprep.mubr.f32.mxu0 0.0
        %2038 = vmatmul.mubr.f32.gmra.mrb[0].mxu0 %v1965
        %v2039 = vpop.f32.mrb[0].mxu0
        %v2040 = vadd.f32 %v728, %v2039
        %v2041 = vpop.f32.mrb[0].mxu0
        %2042 = vmatprep.mubr.f32.mxu0 0.0
        %2043 = vmatmul.mubr.f32.gmra.mrb[0].mxu0 %v1966
        %v2044 = vpop.f32.mrb[0].mxu0
        %v2045 = vadd.f32 %v733, %v2044
        %v2046 = vpop.f32.mrb[0].mxu0
        %2047 = vmatprep.mubr.f32.mxu0 0.0
        %2048 = vmatmul.mubr.f32.gmra.mrb[0].mxu0 %v1967
        %v2049 = vpop.f32.mrb[0].mxu0
        %v2050 = vadd.f32 %v738, %v2049
        %v2051 = vpop.f32.mrb[0].mxu0
        %2052 = vdwg.mxu0
        %s2053 = scalar_lea.vmem %s478, 6
        %v2054 = vld [vmem:[%s2053] sm:$0x1]
        %v2056 = vlaneseq
        %v2057 = vshrl.u32 %v2056, 7
        %v2058 = vsub.s32 0, %v2057
        %v2059 = vrot.slane %v2054, %v2058
        %v2061 = vrcp.pop %v2059
        %v2062 = vmul.f32 %v2035, %v2061
        %v2063 = vmul.f32 %v2040, %v2061
        %v2064 = vmul.f32 %v2045, %v2061
        %v2065 = vmul.f32 %v2050, %v2061
        %s2066 = scalar_lea.vmem %s472, 192 [#allocation11]
        %2067 = vst [vmem:[%s2066] sm:$0xff] %v2062
        %2068 = vst [vmem:[%s2066 + $0x8] sm:$0xff] %v2063
        %2069 = vst [vmem:[%s2066 + $0x10] sm:$0xff] %v2064
        %2070 = vst [vmem:[%s2066 + $0x18] sm:$0xff] %v2065
        %v2071 = vmul.f32 %v1190, %v1170
        %v2072 = vmul.f32 %v1191, %v1176
        %v2073 = vmul.f32 %v1192, %v1182
        %v2074 = vmul.f32 %v1193, %v1188
        %v2075 = vmul.f32 %v1194, %v1170
        %v2076 = vmul.f32 %v1195, %v1176
        %v2077 = vmul.f32 %v1196, %v1182
        %v2078 = vmul.f32 %v1197, %v1188
        %v2079 = vmul.f32 %v1198, %v1170
        %v2080 = vmul.f32 %v1199, %v1176
        %v2081 = vmul.f32 %v1200, %v1182
        %v2082 = vmul.f32 %v1201, %v1188
        %v2083 = vmul.f32 %v1202, %v1170
        %v2084 = vmul.f32 %v1203, %v1176
        %v2085 = vmul.f32 %v1204, %v1182
        %v2086 = vmul.f32 %v1205, %v1188
        %s2087 = scalar_lea.vmem %s416, 224 [#allocation7]
        %v2088 = vld [vmem:[%s2087] sm:$0xff]
        %v2089 = vld [vmem:[%s2087 + $0x8] sm:$0xff]
        %v2090 = vld [vmem:[%s2087 + $0x10] sm:$0xff]
        %v2091 = vld [vmem:[%s2087 + $0x18] sm:$0xff]
        %2092 = vmatprep.subr.mxu0 0.0
        %2093 = vmatpush1.msra.mxu0 %v2071
        %2094 = vmatprep.subr.mxu0 0.0
        %2095 = vmatpush1.msra.mxu0 %v2072
        %2096 = vmatprep.subr.mxu0 0.0
        %2097 = vmatpush1.msra.mxu0 %v2073
        %2098 = vmatprep.subr.mxu0 0.0
        %2099 = vmatpush1.msra.mxu0 %v2074
        %2100 = vmatprep.subr.mxu0 0.0
        %2101 = vmatpush1.msra.mxu0 %v2075
        %2102 = vmatprep.subr.mxu0 0.0
        %2103 = vmatpush1.msra.mxu0 %v2076
        %2104 = vmatprep.subr.mxu0 0.0
        %2105 = vmatpush1.msra.mxu0 %v2077
        %2106 = vmatprep.subr.mxu0 0.0
        %2107 = vmatpush1.msra.mxu0 %v2078
        %2108 = vmatprep.subr.mxu0 0.0
        %2109 = vmatpush1.msra.mxu0 %v2079
        %2110 = vmatprep.subr.mxu0 0.0
        %2111 = vmatpush1.msra.mxu0 %v2080
        %2112 = vmatprep.subr.mxu0 0.0
        %2113 = vmatpush1.msra.mxu0 %v2081
        %2114 = vmatprep.subr.mxu0 0.0
        %2115 = vmatpush1.msra.mxu0 %v2082
        %2116 = vmatprep.subr.mxu0 0.0
        %2117 = vmatpush1.msra.mxu0 %v2083
        %2118 = vmatprep.subr.mxu0 0.0
        %2119 = vmatpush1.msra.mxu0 %v2084
        %2120 = vmatprep.subr.mxu0 0.0
        %2121 = vmatpush1.msra.mxu0 %v2085
        %2122 = vmatprep.subr.mxu0 0.0
        %2123 = vmatpush1.msra.mxu0 %v2086
        %2124 = vmatprep.subr.mxu0 0.0
        %2125 = vmatpush1.msra.mxu0 0.0
        %2126 = vmatprep.subr.mxu0 0.0
        %2127 = vmatpush1.msra.mxu0 0.0
        %2128 = vmatprep.subr.mxu0 0.0
        %2129 = vmatpush1.msra.mxu0 0.0
        %2130 = vmatprep.subr.mxu0 0.0
        %2131 = vmatpush1.msra.mxu0 0.0
        %2132 = vmatprep.subr.mxu0 0.0
        %2133 = vmatpush1.msra.mxu0 0.0
        %2134 = vmatprep.subr.mxu0 0.0
        %2135 = vmatpush1.msra.mxu0 0.0
        %2136 = vmatprep.subr.mxu0 0.0
        %2137 = vmatpush1.msra.mxu0 0.0
        %2138 = vmatprep.subr.mxu0 0.0
        %2139 = vmatpush1.msra.mxu0 0.0
        %2140 = vmatprep.subr.mxu0 0.0
        %2141 = vmatpush1.msra.mxu0 0.0
        %2142 = vmatprep.subr.mxu0 0.0
        %2143 = vmatpush1.msra.mxu0 0.0
        %2144 = vmatprep.subr.mxu0 0.0
        %2145 = vmatpush1.msra.mxu0 0.0
        %2146 = vmatprep.subr.mxu0 0.0
        %2147 = vmatpush1.msra.mxu0 0.0
        %2148 = vmatprep.subr.mxu0 0.0
        %2149 = vmatpush1.msra.mxu0 0.0
        %2150 = vmatprep.subr.mxu0 0.0
        %2151 = vmatpush1.msra.mxu0 0.0
        %2152 = vmatprep.subr.mxu0 0.0
        %2153 = vmatpush1.msra.mxu0 0.0
        %2154 = vmatprep.subr.mxu0 0.0
        %2155 = vmatpush1.msra.mxu0 0.0
        %2156 = vmatprep.mubr.f32.mxu0 0.0
        %2157 = vmatmul.mubr.f32.gmra.mrb[0].mxu0 %v2088
        %v2158 = vpop.f32.mrb[0].mxu0
        %v2159 = vadd.f32 %v743, %v2158
        %v2160 = vpop.f32.mrb[0].mxu0
        %2161 = vmatprep.mubr.f32.mxu0 0.0
        %2162 = vmatmul.mubr.f32.gmra.mrb[0].mxu0 %v2089
        %v2163 = vpop.f32.mrb[0].mxu0
        %v2164 = vadd.f32 %v748, %v2163
        %v2165 = vpop.f32.mrb[0].mxu0
        %2166 = vmatprep.mubr.f32.mxu0 0.0
        %2167 = vmatmul.mubr.f32.gmra.mrb[0].mxu0 %v2090
        %v2168 = vpop.f32.mrb[0].mxu0
        %v2169 = vadd.f32 %v753, %v2168
        %v2170 = vpop.f32.mrb[0].mxu0
        %2171 = vmatprep.mubr.f32.mxu0 0.0
        %2172 = vmatmul.mubr.f32.gmra.mrb[0].mxu0 %v2091
        %v2173 = vpop.f32.mrb[0].mxu0
        %v2174 = vadd.f32 %v758, %v2173
        %v2175 = vpop.f32.mrb[0].mxu0
        %2176 = vdwg.mxu0
        %s2177 = scalar_lea.vmem %s478, 7
        %v2178 = vld [vmem:[%s2177] sm:$0x1]
        %v2180 = vlaneseq
        %v2181 = vshrl.u32 %v2180, 7
        %v2182 = vsub.s32 0, %v2181
        %v2183 = vrot.slane %v2178, %v2182
        %v2185 = vrcp.pop %v2183
        %v2186 = vmul.f32 %v2159, %v2185
        %v2187 = vmul.f32 %v2164, %v2185
        %v2188 = vmul.f32 %v2169, %v2185
        %v2189 = vmul.f32 %v2174, %v2185
        %s2190 = scalar_lea.vmem %s472, 224 [#allocation11]
        %2191 = vst [vmem:[%s2190] sm:$0xff] %v2186
        %2192 = vst [vmem:[%s2190 + $0x8] sm:$0xff] %v2187
        %2193 = vst [vmem:[%s2190 + $0x10] sm:$0xff] %v2188
        %2194 = vst [vmem:[%s2190 + $0x18] sm:$0xff] %v2189
        %s2195 = sand.u32 %s247, 1
        %s2196 = scalar_lea.sflag [#allocation4], %s2195
        %s2197 = sand.u32 %s247, 1
        %s2198 = smul.addr %s2197, 256
        %s2199 = scalar_lea.vmem [#allocation11], %s2198
        // Predicated region
        $region77: #{tpu_custom_call.1} parent=55 // pred_check
          %p2200 = pneg %p257
        $region78: #{tpu_custom_call.1} parent=55 // pred_check_branch
          %2202 = sbr.rel (%p2200) target = $region80
        $region79: #{tpu_custom_call.1} parent=55 // pred_region
          %s2203 = smul.u32 8, %s30
          %s2205 = ssub.s32 4096, 4096
          %2206 = vsyncadd %s2196, %s2205
          %s2207 = smul.addr %s2203, 4
          %s2208 = smul.addr %s2207, 128
          %s2209 = scalar_lea.hbm %s9, %s2208
          %s2210 = sshll.u32 %s2199, 4
          %s2211 = int_to_ptr.vmem [resolvable:$true] %s2210
          %2216 = dma.vmem_to_hbm [thread:$0]  %s2211, 4096, %s2209, %s2196, 128, 128, 8
        $region80: #{tpu_custom_call.1} parent=55 // pred_fallthru
          _
      $region56: #{tpu_custom_call.1} parent=5 // pred_fallthru
        _
      %p2217 = scmp.le.s32.totalorder 2, %s25
      // Predicated region
      $region81: #{tpu_custom_call.1} parent=5 // pred_check
        %p2218 = pneg %p2217
      $region82: #{tpu_custom_call.1} parent=5 // pred_check_branch
        %2220 = sbr.rel (%p2218) target = $region84
      $region83: #{tpu_custom_call.1} parent=5 // pred_region
        %s2221 = ssub.s32 %s25, 2
        // Predicated region
        $region85: #{tpu_custom_call.1} parent=83 // pred_check
          %p2222 = pneg %p263
        $region86: #{tpu_custom_call.1} parent=83 // pred_check_branch
          %2224 = sbr.rel (%p2222) target = $region88
        $region87: #{tpu_custom_call.1} parent=83 // pred_region
          %s2225 = sand.u32 %s248, 1
          %s2226 = scalar_lea.sflag [#allocation4], %s2225
          %s2227 = sand.u32 %s248, 1
          %s2228 = smul.addr %s2227, 256
          %s2229 = scalar_lea.vmem [#allocation11], %s2228
          %2230 = dma.done %s2226, 4096
        $region88: #{tpu_custom_call.1} parent=83 // pred_fallthru
          _
      $region84: #{tpu_custom_call.1} parent=5 // pred_fallthru
        _
    $region6: #{tpu_custom_call.1} parent=1 // loop_footer
      %s29 = sadd.s32 1, %s25
    $region7: #{tpu_custom_call.1} parent=1 // loop_footer_branch
      %24 = sbr.rel target = $region3
    $region8: #{tpu_custom_call.1} parent=1 // loop_exit
      _
    %2231 = vsyncpa [#allocation3], 1
    %s2232 = scalar_lea.sflag [#allocation3], 1
    %2233 = vsyncpa %s2232, 1
    %2234 = vsyncpa [#allocation6], 1
    %s2235 = scalar_lea.sflag [#allocation6], 1
    %2236 = vsyncpa %s2235, 1
    %2237 = vsyncpa [#allocation9], 1
    %2238 = vsyncpa [#allocation4], 1
    %s2239 = scalar_lea.sflag [#allocation4], 1
    %2240 = vsyncpa %s2239, 1

</llo_original>
